<compile_context>
chip_gen: v7x
topology: tpu7x:2x2x1
jax: 0.10.0
libtpu: 0.0.40
codegen_flags: <defaults>
</compile_context>

<pallas_src>
import functools

import jax
import jax.numpy as jnp
from jax import lax
from jax.experimental import pallas as pl
from jax.experimental.pallas import tpu as pltpu


# ------------------------------ fused kernel ------------------------------- #

def _fused_decoding_kernel(x_ref, skip_ref, wtf_ref, bt_ref,
                           w1_ref, b1_ref, w2_ref, b2_ref,
                           o_ref, cat_scr, h1_scr, *, use_strided_interleave):
    """One batch element per grid step. Layout: (channels, length) = (sublanes, lanes).

    cat_scr rows [0:2C]  : ReLU'd ConvTranspose output ("up" half of the concat)
    cat_scr rows [2C:3C] : ReLU'd center-cropped skip  ("skip" half of the concat)
    """
    _, c2, l_in = x_ref.shape            # (1, 2C, L)
    c = c2 // 2
    l_up = 2 * l_in                      # upsampled length
    l_skip = skip_ref.shape[2]
    half = (l_skip - l_up) // 2          # static center-crop offset
    p_out = o_ref.shape[2]               # lane-dense (128-multiple) output width
    w1_len = h1_scr.shape[1]             # = p_out + 2
    cat_w = cat_scr.shape[1]             # = p_out + 4

    f32 = jnp.float32
    bf16 = jnp.bfloat16

    # Zero the never-written pad columns (they only feed the cropped tail, but
    # keep them deterministic / finite).
    pad_w = cat_w - l_up
    if pad_w > 0:
        cat_scr[:, l_up:] = jnp.zeros((cat_scr.shape[0], pad_w), f32)

    # ---- ConvTranspose1d(2C->2C, k=2, s=2): ONE fused phase matmul ----
    x = x_ref[0].astype(bf16)                                         # (2C, L)
    yy = jnp.dot(wtf_ref[...], x, preferred_element_type=f32)         # (4C, L)
    ry0 = jnp.maximum(yy[:c2] + bt_ref[...], 0.0)                     # even cols
    ry1 = jnp.maximum(yy[c2:] + bt_ref[...], 0.0)                     # odd cols

    if use_strided_interleave:
        # O(C*L) interleave: two stride-2 VMEM stores (up[:, 2j]=ry0, up[:, 2j+1]=ry1).
        cat_scr[:c2, pl.ds(0, l_in, stride=2)] = ry0
        cat_scr[:c2, pl.ds(1, l_in, stride=2)] = ry1
    else:
        # Fallback only (toolchains without lane-strided stores): selection matmuls.
        row = lax.broadcasted_iota(jnp.int32, (l_in, l_up), 0)
        col = lax.broadcasted_iota(jnp.int32, (l_in, l_up), 1)
        e0 = (col == 2 * row).astype(f32)
        e1 = (col == 2 * row + 1).astype(f32)
        cat_scr[:c2, :l_up] = (jnp.dot(ry0, e0, preferred_element_type=f32)
                               + jnp.dot(ry1, e1, preferred_element_type=f32))

    # ---- center-crop + hoisted ReLU of the skip connection ----
    cat_scr[c2:c2 + c, :l_up] = jnp.maximum(skip_ref[0, :, half:half + l_up], 0.0)

    # ---- conv1: ReLU -> Conv1d(3C -> C, k=3, valid, bias) ----
    # The concat lives only in VMEM; each tap is ONE dot with contraction dim 3C.
    acc1 = jnp.zeros((c, w1_len), f32)
    for k in range(3):                               # static unroll, 3 taps
        acc1 += jnp.dot(w1_ref[k], cat_scr[:, k:k + w1_len].astype(bf16),
                        preferred_element_type=f32)
    h1_scr[...] = jnp.maximum(acc1 + b1_ref[...], 0.0).astype(h1_scr.dtype)

    # ---- conv2: ReLU -> Conv1d(C -> C, k=3, valid, bias) ----
    acc2 = jnp.zeros((c, p_out), f32)
    for k in range(3):
        acc2 += jnp.dot(w2_ref[k], h1_scr[:, k:k + p_out],
                        preferred_element_type=f32)
    o_ref[0] = (acc2 + b2_ref[...]).astype(o_ref.dtype)


# ------------------------------ DecodingBlock ------------------------------- #

def init_params(key, c_skip):
    c2, c3 = 2 * c_skip, 3 * c_skip
    ks = jax.random.split(key, 6)
    s = 0.1
    return {
        # ConvTranspose1d(2C, 2C, k=2, s=2): weight (in, out, k), bias (out,)
        "wt": s * jax.random.normal(ks[0], (c2, c2, 2), jnp.float32),
        "bt": s * jax.random.normal(ks[1], (c2,), jnp.float32),
        # conv1: Conv1d(3C, C, k=3, bias=True)  (preactivation, no norm)
        "w1": s * jax.random.normal(ks[2], (c_skip, c3, 3), jnp.float32),
        "b1": s * jax.random.normal(ks[3], (c_skip,), jnp.float32),
        # conv2: Conv1d(C, C, k=3, bias=True)
        "w2": s * jax.random.normal(ks[4], (c_skip, c_skip, 3), jnp.float32),
        "b2": s * jax.random.normal(ks[5], (c_skip,), jnp.float32),
    }


def decoding_block_forward(params, skip_ncl, x_ncl, *, interleave="strided"):
    """skip_ncl: (N, C, L_skip);  x_ncl: (N, 2C, L)  -> (N, C, 2L-4).  All NCL."""
    n, c2, l_in = x_ncl.shape
    c = c2 // 2
    l_skip = skip_ncl.shape[2]
    l_up = 2 * l_in
    assert l_in >= 3, "need at least 3 upsampled taps for two valid k=3 convs"
    assert l_skip >= l_up, "skip connection must be at least as long as the upsampled x"
    assert (l_skip - l_up) % 2 == 0, "center_crop requires an even length difference"
    lo2 = l_up - 4
    p_out = ((lo2 + 127) // 128) * 128          # lane-dense output width

    # Host-side weight re-layout + bf16 cast (tiny; constant-folded under jit).
    bf16 = jnp.bfloat16
    wt_f = jnp.concatenate([params["wt"][:, :, 0].T,
                            params["wt"][:, :, 1].T], axis=0).astype(bf16)   # (4C, 2C)
    # conv1 weight with input channels reordered to the kernel's VMEM concat
    # order [up (2C), skip (C)] and taps moved to the leading axis.
    w1_cat = jnp.transpose(
        jnp.concatenate([params["w1"][:, c:, :], params["w1"][:, :c, :]], axis=1),
        (2, 0, 1)).astype(bf16)                                              # (3, C, 3C)
    w2_t = jnp.transpose(params["w2"], (2, 0, 1)).astype(bf16)               # (3, C, C)
    bt = params["bt"].reshape(c2, 1).astype(jnp.float32)
    b1 = params["b1"].reshape(c, 1).astype(jnp.float32)
    b2 = params["b2"].reshape(c, 1).astype(jnp.float32)

    def full_spec(shape):
        return pl.BlockSpec(shape, lambda b: (0,) * len(shape))

    # Explicit VMEM budget: per-step working set (double-buffered I/O + weights
    # + scratch) with ~2x headroom, floored at the default scoped limit.
    bytes_per_step = (
        2 * (c2 * l_in + c * l_skip + c * p_out) * 4          # x / skip / out blocks
        + 2 * (2 * c2 * c2 + 9 * c * c + 3 * c * c) * 2       # bf16 weights
        + 2 * (c2 + 2 * c) * 4                                # biases
        + 3 * c * (p_out + 4) * 4 + c * (p_out + 2) * 2)      # scratch (cat f32, h1 bf16)
    vmem_limit = int(min(96 * 2 ** 20, max(32 * 2 ** 20, 2 * bytes_per_step)))

    kernel = functools.partial(_fused_decoding_kernel,
                               use_strided_interleave=(interleave == "strided"))

    out_padded = pl.pallas_call(
        kernel,
        out_shape=jax.ShapeDtypeStruct((n, c, p_out), jnp.float32),
        grid_spec=pltpu.PrefetchScalarGridSpec(
            num_scalar_prefetch=0,
            grid=(n,),
            in_specs=[
                pl.BlockSpec((1, c2, l_in), lambda b: (b, 0, 0)),    # x
                pl.BlockSpec((1, c, l_skip), lambda b: (b, 0, 0)),   # skip
                full_spec((2 * c2, c2)),    # fused ConvTranspose weight (phase-stacked)
                full_spec((c2, 1)),         # bt
                full_spec((3, c, 3 * c)),   # conv1 weight, per tap, [up|skip] order
                full_spec((c, 1)),          # b1
                full_spec((3, c, c)),       # conv2 weight, per tap
                full_spec((c, 1)),          # b2
            ],
            out_specs=pl.BlockSpec((1, c, p_out), lambda b: (b, 0, 0)),
            scratch_shapes=[
                pltpu.VMEM((3 * c, p_out + 4), jnp.float32),   # ReLU'd [up|skip] concat
                pltpu.VMEM((c, p_out + 2), jnp.bfloat16),      # ReLU'd conv1 output
            ],
        ),
        compiler_params=pltpu.CompilerParams(
            dimension_semantics=("parallel",),                 # megacore sharding
            vmem_limit_bytes=vmem_limit),
    )(x_ncl, skip_ncl, wt_f, bt, w1_cat, b1, w2_t, b2)

    return out_padded[:, :, :lo2]


# ------------------------- pure-XLA reference (NCL) ------------------------- #

def reference_forward(params, skip, x):
    dn = ("NCH", "OIH", "NCH")
    # ConvTranspose1d(k=2, s=2) == lhs-dilated conv with flipped/transposed kernel
    w_conv = jnp.transpose(jnp.flip(params["wt"], axis=2), (1, 0, 2))
    x = lax.conv_general_dilated(x, w_conv, (1,), [(1, 1)],
                                 lhs_dilation=(2,), dimension_numbers=dn)
    x = x + params["bt"][None, :, None]

    l_skip, l_up = skip.shape[2], x.shape[2]
    half = (l_skip - l_up) // 2
    skip = skip[:, :, half:l_skip - half]
    x = jnp.concatenate([skip, x], axis=1)

    def block(h, w, b):
        h = jnp.maximum(h, 0.0)
        h = lax.conv_general_dilated(h, w, (1,), "VALID", dimension_numbers=dn)
        return h + b[None, :, None]

    x = block(x, params["w1"], params["b1"])
    x = block(x, params["w2"], params["b2"])
    return x


# ----------------------------------- main ----------------------------------- #

if __name__ == "__main__":
    key = jax.random.PRNGKey(0)
    C = 4          # in_channels_skip_connection
    N = 2
    L_X = 8        # x length (upsampled to 16)
    L_SKIP = 20    # skip length (center-cropped to 16)

    k_skip, k_x, k_p = jax.random.split(key, 3)
    skip = jax.random.normal(k_skip, (N, C, L_SKIP), jnp.float32)
    x = jax.random.normal(k_x, (N, 2 * C, L_X), jnp.float32)
    params = init_params(k_p, C)

    ref = reference_forward(params, skip, x)

    def run(mode):
        out = decoding_block_forward(params, skip, x, interleave=mode)
        out = jax.block_until_ready(out)
        assert out.shape == (N, C, 2 * L_X - 4), out.shape
        # bf16-MXU path (deliberate, per perf review) -> slightly relaxed tolerance.
        ok = bool(jnp.allclose(out, ref, atol=2e-2, rtol=2e-2))
        return out, ok

    try:
        out, ok = run("strided")
    except Exception:            # lane-strided store unsupported on this toolchain
        out, ok = None, False
    if not ok:
        out, ok = run("matmul")  # known-good fallback interleave
    if not ok:
        raise AssertionError(
            f"mismatch vs reference, max abs err = {jnp.max(jnp.abs(out - ref))}")

    print("KERNEL_OK")
</pallas_src>

<mosaic_0001>
module attributes {stable_mosaic.version = 11 : i64} {
  func.func @_fused_decoding_kernel(%arg0: i32, %arg1: memref<1x8x8xf32, #tpu.memory_space<vmem>>, %arg2: memref<1x4x20xf32, #tpu.memory_space<vmem>>, %arg3: memref<16x8xbf16, #tpu.memory_space<vmem>>, %arg4: memref<8x1xf32, #tpu.memory_space<vmem>>, %arg5: memref<3x4x12xbf16, #tpu.memory_space<vmem>>, %arg6: memref<4x1xf32, #tpu.memory_space<vmem>>, %arg7: memref<3x4x4xbf16, #tpu.memory_space<vmem>>, %arg8: memref<4x1xf32, #tpu.memory_space<vmem>>, %arg9: memref<1x4x128xf32, #tpu.memory_space<vmem>>, %arg10: memref<12x132xf32, #tpu.memory_space<vmem>>, %arg11: memref<4x130xbf16, #tpu.memory_space<vmem>>) attributes {dimension_semantics = [#tpu.dimension_semantics<parallel>], iteration_bounds = array<i64: 2>, scalar_prefetch = 0 : i64, scratch_operands = 2 : i64, tpu.core_type = #tpu.core_type<tc>, window_params = [{transform_indices = @transform_0, window_bounds = array<i64: 1, 8, 8>}, {transform_indices = @transform_1, window_bounds = array<i64: 1, 4, 20>}, {pipeline_mode = #tpu.pipeline_mode<synchronous>, transform_indices = @transform_2, window_bounds = array<i64: 16, 8>}, {pipeline_mode = #tpu.pipeline_mode<synchronous>, transform_indices = @transform_3, window_bounds = array<i64: 8, 1>}, {pipeline_mode = #tpu.pipeline_mode<synchronous>, transform_indices = @transform_4, window_bounds = array<i64: 3, 4, 12>}, {pipeline_mode = #tpu.pipeline_mode<synchronous>, transform_indices = @transform_5, window_bounds = array<i64: 4, 1>}, {pipeline_mode = #tpu.pipeline_mode<synchronous>, transform_indices = @transform_6, window_bounds = array<i64: 3, 4, 4>}, {pipeline_mode = #tpu.pipeline_mode<synchronous>, transform_indices = @transform_7, window_bounds = array<i64: 4, 1>}, {transform_indices = @transform_8, window_bounds = array<i64: 1, 4, 128>}]} {
    %cst = arith.constant 0.000000e+00 : f32
    %0 = vector.broadcast %cst : f32 to vector<12x116xf32>
    %c0 = arith.constant 0 : index
    %c16 = arith.constant 16 : index
    %1 = vector.load %arg10[%c0, %c16] : memref<12x132xf32, #tpu.memory_space<vmem>>, vector<12x116xf32>
    tpu.vector_store %arg10[%c0, %c16], %0 {strides = array<i32>} : memref<12x132xf32, #tpu.memory_space<vmem>>, vector<12x116xf32>,
    %c0_0 = arith.constant 0 : index
    %c0_1 = arith.constant 0 : index
    %c0_2 = arith.constant 0 : index
    %2 = vector.load %arg1[%c0_0, %c0_1, %c0_2] : memref<1x8x8xf32, #tpu.memory_space<vmem>>, vector<1x8x8xf32>
    %3 = vector.shape_cast %2 : vector<1x8x8xf32> to vector<8x8xf32>
    %4 = arith.truncf %3 : vector<8x8xf32> to vector<8x8xbf16>
    %c0_3 = arith.constant 0 : index
    %c0_4 = arith.constant 0 : index
    %5 = vector.load %arg3[%c0_3, %c0_4] : memref<16x8xbf16, #tpu.memory_space<vmem>>, vector<16x8xbf16>
    %cst_5 = arith.constant dense<0.000000e+00> : vector<16x8xf32>
    %6 = tpu.matmul %5, %4, %cst_5 {dimension_numbers = #tpu.dot_dimension_numbers<[1], [0], [0], [1], [0, 0, 1, 1], [], []>} : vector<16x8xbf16>, vector<8x8xbf16>, vector<16x8xf32> -> vector<16x8xf32>
    %7 = vector.extract_strided_slice %6 {offsets = [0, 0], sizes = [8, 8], strides = [1, 1]} : vector<16x8xf32> to vector<8x8xf32>
    %c0_6 = arith.constant 0 : index
    %c0_7 = arith.constant 0 : index
    %8 = vector.load %arg4[%c0_6, %c0_7] : memref<8x1xf32, #tpu.memory_space<vmem>>, vector<8x1xf32>
    %9 = vector.broadcast %8 : vector<8x1xf32> to vector<8x8xf32>
    %10 = arith.addf %7, %9 : vector<8x8xf32>
    %cst_8 = arith.constant 0.000000e+00 : f32
    %11 = vector.broadcast %cst_8 : f32 to vector<8x8xf32>
    %12 = arith.maximumf %10, %11 : vector<8x8xf32>
    %13 = vector.extract_strided_slice %6 {offsets = [8, 0], sizes = [8, 8], strides = [1, 1]} : vector<16x8xf32> to vector<8x8xf32>
    %c0_9 = arith.constant 0 : index
    %c0_10 = arith.constant 0 : index
    %14 = vector.load %arg4[%c0_9, %c0_10] : memref<8x1xf32, #tpu.memory_space<vmem>>, vector<8x1xf32>
    %15 = vector.broadcast %14 : vector<8x1xf32> to vector<8x8xf32>
    %16 = arith.addf %13, %15 : vector<8x8xf32>
    %cst_11 = arith.constant 0.000000e+00 : f32
    %17 = vector.broadcast %cst_11 : f32 to vector<8x8xf32>
    %18 = arith.maximumf %16, %17 : vector<8x8xf32>
    %c0_12 = arith.constant 0 : index
    %c0_13 = arith.constant 0 : index
    %19 = tpu.strided_load %arg10[%c0_12, %c0_13] {strides = array<i32: 1, 2>} : memref<12x132xf32, #tpu.memory_space<vmem>>, vector<8x8xf32>
    tpu.strided_store %arg10[%c0_12, %c0_13], %12 {strides = array<i32: 1, 2>} : memref<12x132xf32, #tpu.memory_space<vmem>>, vector<8x8xf32>
    %c0_14 = arith.constant 0 : index
    %c1 = arith.constant 1 : index
    %20 = tpu.strided_load %arg10[%c0_14, %c1] {strides = array<i32: 1, 2>} : memref<12x132xf32, #tpu.memory_space<vmem>>, vector<8x8xf32>
    tpu.strided_store %arg10[%c0_14, %c1], %18 {strides = array<i32: 1, 2>} : memref<12x132xf32, #tpu.memory_space<vmem>>, vector<8x8xf32>
    %c0_15 = arith.constant 0 : index
    %c0_16 = arith.constant 0 : index
    %c2 = arith.constant 2 : index
    %21 = vector.load %arg2[%c0_15, %c0_16, %c2] : memref<1x4x20xf32, #tpu.memory_space<vmem>>, vector<1x4x16xf32>
    %22 = vector.shape_cast %21 : vector<1x4x16xf32> to vector<4x16xf32>
    %cst_17 = arith.constant 0.000000e+00 : f32
    %23 = vector.broadcast %cst_17 : f32 to vector<4x16xf32>
    %24 = arith.maximumf %22, %23 : vector<4x16xf32>
    %c8 = arith.constant 8 : index
    %c0_18 = arith.constant 0 : index
    %25 = vector.load %arg10[%c8, %c0_18] : memref<12x132xf32, #tpu.memory_space<vmem>>, vector<4x16xf32>
    tpu.vector_store %arg10[%c8, %c0_18], %24 {strides = array<i32>} : memref<12x132xf32, #tpu.memory_space<vmem>>, vector<4x16xf32>,
    %cst_19 = arith.constant 0.000000e+00 : f32
    %26 = vector.broadcast %cst_19 : f32 to vector<4x130xf32>
    %c0_20 = arith.constant 0 : index
    %c0_21 = arith.constant 0 : index
    %c0_22 = arith.constant 0 : index
    %27 = vector.load %arg5[%c0_20, %c0_21, %c0_22] : memref<3x4x12xbf16, #tpu.memory_space<vmem>>, vector<1x4x12xbf16>
    %28 = vector.shape_cast %27 : vector<1x4x12xbf16> to vector<4x12xbf16>
    %c0_23 = arith.constant 0 : index
    %c0_24 = arith.constant 0 : index
    %29 = vector.load %arg10[%c0_23, %c0_24] : memref<12x132xf32, #tpu.memory_space<vmem>>, vector<12x130xf32>
    %30 = arith.truncf %29 : vector<12x130xf32> to vector<12x130xbf16>
    %cst_25 = arith.constant dense<0.000000e+00> : vector<4x130xf32>
    %31 = tpu.matmul %28, %30, %cst_25 {dimension_numbers = #tpu.dot_dimension_numbers<[1], [0], [0], [1], [0, 0, 1, 1], [], []>} : vector<4x12xbf16>, vector<12x130xbf16>, vector<4x130xf32> -> vector<4x130xf32>
    %32 = arith.addf %26, %31 : vector<4x130xf32>
    %c1_26 = arith.constant 1 : index
    %c0_27 = arith.constant 0 : index
    %c0_28 = arith.constant 0 : index
    %33 = vector.load %arg5[%c1_26, %c0_27, %c0_28] : memref<3x4x12xbf16, #tpu.memory_space<vmem>>, vector<1x4x12xbf16>
    %34 = vector.shape_cast %33 : vector<1x4x12xbf16> to vector<4x12xbf16>
    %c0_29 = arith.constant 0 : index
    %c1_30 = arith.constant 1 : index
    %35 = vector.load %arg10[%c0_29, %c1_30] : memref<12x132xf32, #tpu.memory_space<vmem>>, vector<12x130xf32>
    %36 = arith.truncf %35 : vector<12x130xf32> to vector<12x130xbf16>
    %cst_31 = arith.constant dense<0.000000e+00> : vector<4x130xf32>
    %37 = tpu.matmul %34, %36, %cst_31 {dimension_numbers = #tpu.dot_dimension_numbers<[1], [0], [0], [1], [0, 0, 1, 1], [], []>} : vector<4x12xbf16>, vector<12x130xbf16>, vector<4x130xf32> -> vector<4x130xf32>
    %38 = arith.addf %32, %37 : vector<4x130xf32>
    %c2_32 = arith.constant 2 : index
    %c0_33 = arith.constant 0 : index
    %c0_34 = arith.constant 0 : index
    %39 = vector.load %arg5[%c2_32, %c0_33, %c0_34] : memref<3x4x12xbf16, #tpu.memory_space<vmem>>, vector<1x4x12xbf16>
    %40 = vector.shape_cast %39 : vector<1x4x12xbf16> to vector<4x12xbf16>
    %c0_35 = arith.constant 0 : index
    %c2_36 = arith.constant 2 : index
    %41 = vector.load %arg10[%c0_35, %c2_36] : memref<12x132xf32, #tpu.memory_space<vmem>>, vector<12x130xf32>
    %42 = arith.truncf %41 : vector<12x130xf32> to vector<12x130xbf16>
    %cst_37 = arith.constant dense<0.000000e+00> : vector<4x130xf32>
    %43 = tpu.matmul %40, %42, %cst_37 {dimension_numbers = #tpu.dot_dimension_numbers<[1], [0], [0], [1], [0, 0, 1, 1], [], []>} : vector<4x12xbf16>, vector<12x130xbf16>, vector<4x130xf32> -> vector<4x130xf32>
    %44 = arith.addf %38, %43 : vector<4x130xf32>
    %c0_38 = arith.constant 0 : index
    %c0_39 = arith.constant 0 : index
    %45 = vector.load %arg6[%c0_38, %c0_39] : memref<4x1xf32, #tpu.memory_space<vmem>>, vector<4x1xf32>
    %46 = vector.broadcast %45 : vector<4x1xf32> to vector<4x130xf32>
    %47 = arith.addf %44, %46 : vector<4x130xf32>
    %cst_40 = arith.constant 0.000000e+00 : f32
    %48 = vector.broadcast %cst_40 : f32 to vector<4x130xf32>
    %49 = arith.maximumf %47, %48 : vector<4x130xf32>
    %50 = arith.truncf %49 : vector<4x130xf32> to vector<4x130xbf16>
    %c0_41 = arith.constant 0 : index
    %c0_42 = arith.constant 0 : index
    %51 = vector.load %arg11[%c0_41, %c0_42] : memref<4x130xbf16, #tpu.memory_space<vmem>>, vector<4x130xbf16>
    tpu.vector_store %arg11[%c0_41, %c0_42], %50 {strides = array<i32>} : memref<4x130xbf16, #tpu.memory_space<vmem>>, vector<4x130xbf16>,
    %cst_43 = arith.constant 0.000000e+00 : f32
    %52 = vector.broadcast %cst_43 : f32 to vector<4x128xf32>
    %c0_44 = arith.constant 0 : index
    %c0_45 = arith.constant 0 : index
    %c0_46 = arith.constant 0 : index
    %53 = vector.load %arg7[%c0_44, %c0_45, %c0_46] : memref<3x4x4xbf16, #tpu.memory_space<vmem>>, vector<1x4x4xbf16>
    %54 = vector.shape_cast %53 : vector<1x4x4xbf16> to vector<4x4xbf16>
    %c0_47 = arith.constant 0 : index
    %c0_48 = arith.constant 0 : index
    %55 = vector.load %arg11[%c0_47, %c0_48] : memref<4x130xbf16, #tpu.memory_space<vmem>>, vector<4x128xbf16>
    %cst_49 = arith.constant dense<0.000000e+00> : vector<4x128xf32>
    %56 = tpu.matmul %54, %55, %cst_49 {dimension_numbers = #tpu.dot_dimension_numbers<[1], [0], [0], [1], [0, 0, 1, 1], [], []>} : vector<4x4xbf16>, vector<4x128xbf16>, vector<4x128xf32> -> vector<4x128xf32>
    %57 = arith.addf %52, %56 : vector<4x128xf32>
    %c1_50 = arith.constant 1 : index
    %c0_51 = arith.constant 0 : index
    %c0_52 = arith.constant 0 : index
    %58 = vector.load %arg7[%c1_50, %c0_51, %c0_52] : memref<3x4x4xbf16, #tpu.memory_space<vmem>>, vector<1x4x4xbf16>
    %59 = vector.shape_cast %58 : vector<1x4x4xbf16> to vector<4x4xbf16>
    %c0_53 = arith.constant 0 : index
    %c1_54 = arith.constant 1 : index
    %60 = vector.load %arg11[%c0_53, %c1_54] : memref<4x130xbf16, #tpu.memory_space<vmem>>, vector<4x128xbf16>
    %cst_55 = arith.constant dense<0.000000e+00> : vector<4x128xf32>
    %61 = tpu.matmul %59, %60, %cst_55 {dimension_numbers = #tpu.dot_dimension_numbers<[1], [0], [0], [1], [0, 0, 1, 1], [], []>} : vector<4x4xbf16>, vector<4x128xbf16>, vector<4x128xf32> -> vector<4x128xf32>
    %62 = arith.addf %57, %61 : vector<4x128xf32>
    %c2_56 = arith.constant 2 : index
    %c0_57 = arith.constant 0 : index
    %c0_58 = arith.constant 0 : index
    %63 = vector.load %arg7[%c2_56, %c0_57, %c0_58] : memref<3x4x4xbf16, #tpu.memory_space<vmem>>, vector<1x4x4xbf16>
    %64 = vector.shape_cast %63 : vector<1x4x4xbf16> to vector<4x4xbf16>
    %c0_59 = arith.constant 0 : index
    %c2_60 = arith.constant 2 : index
    %65 = vector.load %arg11[%c0_59, %c2_60] : memref<4x130xbf16, #tpu.memory_space<vmem>>, vector<4x128xbf16>
    %cst_61 = arith.constant dense<0.000000e+00> : vector<4x128xf32>
    %66 = tpu.matmul %64, %65, %cst_61 {dimension_numbers = #tpu.dot_dimension_numbers<[1], [0], [0], [1], [0, 0, 1, 1], [], []>} : vector<4x4xbf16>, vector<4x128xbf16>, vector<4x128xf32> -> vector<4x128xf32>
    %67 = arith.addf %62, %66 : vector<4x128xf32>
    %c0_62 = arith.constant 0 : index
    %c0_63 = arith.constant 0 : index
    %68 = vector.load %arg8[%c0_62, %c0_63] : memref<4x1xf32, #tpu.memory_space<vmem>>, vector<4x1xf32>
    %69 = vector.broadcast %68 : vector<4x1xf32> to vector<4x128xf32>
    %70 = arith.addf %67, %69 : vector<4x128xf32>
    %c0_64 = arith.constant 0 : index
    %c0_65 = arith.constant 0 : index
    %c0_66 = arith.constant 0 : index
    %71 = vector.load %arg9[%c0_64, %c0_65, %c0_66] : memref<1x4x128xf32, #tpu.memory_space<vmem>>, vector<1x4x128xf32>
    %72 = vector.shape_cast %71 : vector<1x4x128xf32> to vector<4x128xf32>
    %73 = vector.shape_cast %70 : vector<4x128xf32> to vector<1x4x128xf32>
    tpu.vector_store %arg9[%c0_64, %c0_65, %c0_66], %73 {strides = array<i32>} : memref<1x4x128xf32, #tpu.memory_space<vmem>>, vector<1x4x128xf32>,
    return
  }
  func.func @transform_0(%arg0: i32) -> (i32, i32, i32) {
    %c0_i32 = arith.constant 0 : i32
    %c0_i32_0 = arith.constant 0 : i32
    %c0_i32_1 = arith.constant 0 : i32
    return %arg0, %c0_i32, %c0_i32_0 : i32, i32, i32
  }
  func.func @transform_1(%arg0: i32) -> (i32, i32, i32) {
    %c0_i32 = arith.constant 0 : i32
    %c0_i32_0 = arith.constant 0 : i32
    %c0_i32_1 = arith.constant 0 : i32
    return %arg0, %c0_i32, %c0_i32_0 : i32, i32, i32
  }
  func.func @transform_2(%arg0: i32) -> (i32, i32) {
    %c0_i32 = arith.constant 0 : i32
    %c0_i32_0 = arith.constant 0 : i32
    %c0_i32_1 = arith.constant 0 : i32
    return %c0_i32, %c0_i32_0 : i32, i32
  }
  func.func @transform_3(%arg0: i32) -> (i32, i32) {
    %c0_i32 = arith.constant 0 : i32
    %c0_i32_0 = arith.constant 0 : i32
    %c0_i32_1 = arith.constant 0 : i32
    return %c0_i32, %c0_i32_0 : i32, i32
  }
  func.func @transform_4(%arg0: i32) -> (i32, i32, i32) {
    %c0_i32 = arith.constant 0 : i32
    %c0_i32_0 = arith.constant 0 : i32
    %c0_i32_1 = arith.constant 0 : i32
    %c0_i32_2 = arith.constant 0 : i32
    return %c0_i32, %c0_i32_0, %c0_i32_1 : i32, i32, i32
  }
  func.func @transform_5(%arg0: i32) -> (i32, i32) {
    %c0_i32 = arith.constant 0 : i32
    %c0_i32_0 = arith.constant 0 : i32
    %c0_i32_1 = arith.constant 0 : i32
    return %c0_i32, %c0_i32_0 : i32, i32
  }
  func.func @transform_6(%arg0: i32) -> (i32, i32, i32) {
    %c0_i32 = arith.constant 0 : i32
    %c0_i32_0 = arith.constant 0 : i32
    %c0_i32_1 = arith.constant 0 : i32
    %c0_i32_2 = arith.constant 0 : i32
    return %c0_i32, %c0_i32_0, %c0_i32_1 : i32, i32, i32
  }
  func.func @transform_7(%arg0: i32) -> (i32, i32) {
    %c0_i32 = arith.constant 0 : i32
    %c0_i32_0 = arith.constant 0 : i32
    %c0_i32_1 = arith.constant 0 : i32
    return %c0_i32, %c0_i32_0 : i32, i32
  }
  func.func @transform_8(%arg0: i32) -> (i32, i32, i32) {
    %c0_i32 = arith.constant 0 : i32
    %c0_i32_0 = arith.constant 0 : i32
    %c0_i32_1 = arith.constant 0 : i32
    return %arg0, %c0_i32, %c0_i32_0 : i32, i32, i32
  }
}

module attributes {stable_mosaic.version = 11 : i64} {
  func.func @_fused_decoding_kernel(%arg0: i32, %arg1: memref<1x8x8xf32, #tpu.memory_space<vmem>>, %arg2: memref<1x4x20xf32, #tpu.memory_space<vmem>>, %arg3: memref<16x8xbf16, #tpu.memory_space<vmem>>, %arg4: memref<8x1xf32, #tpu.memory_space<vmem>>, %arg5: memref<3x4x12xbf16, #tpu.memory_space<vmem>>, %arg6: memref<4x1xf32, #tpu.memory_space<vmem>>, %arg7: memref<3x4x4xbf16, #tpu.memory_space<vmem>>, %arg8: memref<4x1xf32, #tpu.memory_space<vmem>>, %arg9: memref<1x4x128xf32, #tpu.memory_space<vmem>>, %arg10: memref<12x132xf32, #tpu.memory_space<vmem>>, %arg11: memref<4x130xbf16, #tpu.memory_space<vmem>>) attributes {dimension_semantics = [#tpu.dimension_semantics<parallel>], iteration_bounds = array<i64: 2>, scalar_prefetch = 0 : i64, scratch_operands = 2 : i64, tpu.core_type = #tpu.core_type<tc>, window_params = [{transform_indices = @transform_0, window_bounds = array<i64: 1, 8, 8>}, {transform_indices = @transform_1, window_bounds = array<i64: 1, 4, 20>}, {pipeline_mode = #tpu.pipeline_mode<synchronous>, transform_indices = @transform_2, window_bounds = array<i64: 16, 8>}, {pipeline_mode = #tpu.pipeline_mode<synchronous>, transform_indices = @transform_3, window_bounds = array<i64: 8, 1>}, {pipeline_mode = #tpu.pipeline_mode<synchronous>, transform_indices = @transform_4, window_bounds = array<i64: 3, 4, 12>}, {pipeline_mode = #tpu.pipeline_mode<synchronous>, transform_indices = @transform_5, window_bounds = array<i64: 4, 1>}, {pipeline_mode = #tpu.pipeline_mode<synchronous>, transform_indices = @transform_6, window_bounds = array<i64: 3, 4, 4>}, {pipeline_mode = #tpu.pipeline_mode<synchronous>, transform_indices = @transform_7, window_bounds = array<i64: 4, 1>}, {transform_indices = @transform_8, window_bounds = array<i64: 1, 4, 128>}]} {
    %cst = arith.constant 0.000000e+00 : f32
    %0 = vector.broadcast %cst : f32 to vector<12x116xf32>
    %c0 = arith.constant 0 : index
    %c16 = arith.constant 16 : index
    %1 = vector.load %arg10[%c0, %c16] : memref<12x132xf32, #tpu.memory_space<vmem>>, vector<12x116xf32>
    tpu.vector_store %arg10[%c0, %c16], %0 {strides = array<i32>} : memref<12x132xf32, #tpu.memory_space<vmem>>, vector<12x116xf32>,
    %c0_0 = arith.constant 0 : index
    %c0_1 = arith.constant 0 : index
    %c0_2 = arith.constant 0 : index
    %2 = vector.load %arg1[%c0_0, %c0_1, %c0_2] : memref<1x8x8xf32, #tpu.memory_space<vmem>>, vector<1x8x8xf32>
    %3 = vector.shape_cast %2 : vector<1x8x8xf32> to vector<8x8xf32>
    %4 = arith.truncf %3 : vector<8x8xf32> to vector<8x8xbf16>
    %c0_3 = arith.constant 0 : index
    %c0_4 = arith.constant 0 : index
    %5 = vector.load %arg3[%c0_3, %c0_4] : memref<16x8xbf16, #tpu.memory_space<vmem>>, vector<16x8xbf16>
    %cst_5 = arith.constant dense<0.000000e+00> : vector<16x8xf32>
    %6 = tpu.matmul %5, %4, %cst_5 {dimension_numbers = #tpu.dot_dimension_numbers<[1], [0], [0], [1], [0, 0, 1, 1], [], []>} : vector<16x8xbf16>, vector<8x8xbf16>, vector<16x8xf32> -> vector<16x8xf32>
    %7 = vector.extract_strided_slice %6 {offsets = [0, 0], sizes = [8, 8], strides = [1, 1]} : vector<16x8xf32> to vector<8x8xf32>
    %c0_6 = arith.constant 0 : index
    %c0_7 = arith.constant 0 : index
    %8 = vector.load %arg4[%c0_6, %c0_7] : memref<8x1xf32, #tpu.memory_space<vmem>>, vector<8x1xf32>
    %9 = vector.broadcast %8 : vector<8x1xf32> to vector<8x8xf32>
    %10 = arith.addf %7, %9 : vector<8x8xf32>
    %cst_8 = arith.constant 0.000000e+00 : f32
    %11 = vector.broadcast %cst_8 : f32 to vector<8x8xf32>
    %12 = arith.maximumf %10, %11 : vector<8x8xf32>
    %13 = vector.extract_strided_slice %6 {offsets = [8, 0], sizes = [8, 8], strides = [1, 1]} : vector<16x8xf32> to vector<8x8xf32>
    %c0_9 = arith.constant 0 : index
    %c0_10 = arith.constant 0 : index
    %14 = vector.load %arg4[%c0_9, %c0_10] : memref<8x1xf32, #tpu.memory_space<vmem>>, vector<8x1xf32>
    %15 = vector.broadcast %14 : vector<8x1xf32> to vector<8x8xf32>
    %16 = arith.addf %13, %15 : vector<8x8xf32>
    %cst_11 = arith.constant 0.000000e+00 : f32
    %17 = vector.broadcast %cst_11 : f32 to vector<8x8xf32>
    %18 = arith.maximumf %16, %17 : vector<8x8xf32>
    %19 = tpu.iota {dimensions = array<i32: 0>} : vector<8x16xi32>
    %20 = tpu.iota {dimensions = array<i32: 1>} : vector<8x16xi32>
    %c2_i32 = arith.constant 2 : i32
    %21 = vector.broadcast %c2_i32 : i32 to vector<8x16xi32>
    %22 = arith.muli %21, %19 : vector<8x16xi32>
    %23 = arith.cmpi eq, %20, %22 : vector<8x16xi32>
    %24 = arith.extui %23 : vector<8x16xi1> to vector<8x16xi32>
    %25 = arith.sitofp %24 : vector<8x16xi32> to vector<8x16xf32>
    %c2_i32_12 = arith.constant 2 : i32
    %26 = vector.broadcast %c2_i32_12 : i32 to vector<8x16xi32>
    %27 = arith.muli %26, %19 : vector<8x16xi32>
    %c1_i32 = arith.constant 1 : i32
    %28 = vector.broadcast %c1_i32 : i32 to vector<8x16xi32>
    %29 = arith.addi %27, %28 : vector<8x16xi32>
    %30 = arith.cmpi eq, %20, %29 : vector<8x16xi32>
    %31 = arith.extui %30 : vector<8x16xi1> to vector<8x16xi32>
    %32 = arith.sitofp %31 : vector<8x16xi32> to vector<8x16xf32>
    %cst_13 = arith.constant dense<0.000000e+00> : vector<8x16xf32>
    %33 = tpu.matmul %12, %25, %cst_13 {dimension_numbers = #tpu.dot_dimension_numbers<[1], [0], [0], [1], [0, 0, 1, 1], [], []>} : vector<8x8xf32>, vector<8x16xf32>, vector<8x16xf32> -> vector<8x16xf32>
    %cst_14 = arith.constant dense<0.000000e+00> : vector<8x16xf32>
    %34 = tpu.matmul %18, %32, %cst_14 {dimension_numbers = #tpu.dot_dimension_numbers<[1], [0], [0], [1], [0, 0, 1, 1], [], []>} : vector<8x8xf32>, vector<8x16xf32>, vector<8x16xf32> -> vector<8x16xf32>
    %35 = arith.addf %33, %34 : vector<8x16xf32>
    %c0_15 = arith.constant 0 : index
    %c0_16 = arith.constant 0 : index
    %36 = vector.load %arg10[%c0_15, %c0_16] : memref<12x132xf32, #tpu.memory_space<vmem>>, vector<8x16xf32>
    tpu.vector_store %arg10[%c0_15, %c0_16], %35 {strides = array<i32>} : memref<12x132xf32, #tpu.memory_space<vmem>>, vector<8x16xf32>,
    %c0_17 = arith.constant 0 : index
    %c0_18 = arith.constant 0 : index
    %c2 = arith.constant 2 : index
    %37 = vector.load %arg2[%c0_17, %c0_18, %c2] : memref<1x4x20xf32, #tpu.memory_space<vmem>>, vector<1x4x16xf32>
    %38 = vector.shape_cast %37 : vector<1x4x16xf32> to vector<4x16xf32>
    %cst_19 = arith.constant 0.000000e+00 : f32
    %39 = vector.broadcast %cst_19 : f32 to vector<4x16xf32>
    %40 = arith.maximumf %38, %39 : vector<4x16xf32>
    %c8 = arith.constant 8 : index
    %c0_20 = arith.constant 0 : index
    %41 = vector.load %arg10[%c8, %c0_20] : memref<12x132xf32, #tpu.memory_space<vmem>>, vector<4x16xf32>
    tpu.vector_store %arg10[%c8, %c0_20], %40 {strides = array<i32>} : memref<12x132xf32, #tpu.memory_space<vmem>>, vector<4x16xf32>,
    %cst_21 = arith.constant 0.000000e+00 : f32
    %42 = vector.broadcast %cst_21 : f32 to vector<4x130xf32>
    %c0_22 = arith.constant 0 : index
    %c0_23 = arith.constant 0 : index
    %c0_24 = arith.constant 0 : index
    %43 = vector.load %arg5[%c0_22, %c0_23, %c0_24] : memref<3x4x12xbf16, #tpu.memory_space<vmem>>, vector<1x4x12xbf16>
    %44 = vector.shape_cast %43 : vector<1x4x12xbf16> to vector<4x12xbf16>
    %c0_25 = arith.constant 0 : index
    %c0_26 = arith.constant 0 : index
    %45 = vector.load %arg10[%c0_25, %c0_26] : memref<12x132xf32, #tpu.memory_space<vmem>>, vector<12x130xf32>
    %46 = arith.truncf %45 : vector<12x130xf32> to vector<12x130xbf16>
    %cst_27 = arith.constant dense<0.000000e+00> : vector<4x130xf32>
    %47 = tpu.matmul %44, %46, %cst_27 {dimension_numbers = #tpu.dot_dimension_numbers<[1], [0], [0], [1], [0, 0, 1, 1], [], []>} : vector<4x12xbf16>, vector<12x130xbf16>, vector<4x130xf32> -> vector<4x130xf32>
    %48 = arith.addf %42, %47 : vector<4x130xf32>
    %c1 = arith.constant 1 : index
    %c0_28 = arith.constant 0 : index
    %c0_29 = arith.constant 0 : index
    %49 = vector.load %arg5[%c1, %c0_28, %c0_29] : memref<3x4x12xbf16, #tpu.memory_space<vmem>>, vector<1x4x12xbf16>
    %50 = vector.shape_cast %49 : vector<1x4x12xbf16> to vector<4x12xbf16>
    %c0_30 = arith.constant 0 : index
    %c1_31 = arith.constant 1 : index
    %51 = vector.load %arg10[%c0_30, %c1_31] : memref<12x132xf32, #tpu.memory_space<vmem>>, vector<12x130xf32>
    %52 = arith.truncf %51 : vector<12x130xf32> to vector<12x130xbf16>
    %cst_32 = arith.constant dense<0.000000e+00> : vector<4x130xf32>
    %53 = tpu.matmul %50, %52, %cst_32 {dimension_numbers = #tpu.dot_dimension_numbers<[1], [0], [0], [1], [0, 0, 1, 1], [], []>} : vector<4x12xbf16>, vector<12x130xbf16>, vector<4x130xf32> -> vector<4x130xf32>
    %54 = arith.addf %48, %53 : vector<4x130xf32>
    %c2_33 = arith.constant 2 : index
    %c0_34 = arith.constant 0 : index
    %c0_35 = arith.constant 0 : index
    %55 = vector.load %arg5[%c2_33, %c0_34, %c0_35] : memref<3x4x12xbf16, #tpu.memory_space<vmem>>, vector<1x4x12xbf16>
    %56 = vector.shape_cast %55 : vector<1x4x12xbf16> to vector<4x12xbf16>
    %c0_36 = arith.constant 0 : index
    %c2_37 = arith.constant 2 : index
    %57 = vector.load %arg10[%c0_36, %c2_37] : memref<12x132xf32, #tpu.memory_space<vmem>>, vector<12x130xf32>
    %58 = arith.truncf %57 : vector<12x130xf32> to vector<12x130xbf16>
    %cst_38 = arith.constant dense<0.000000e+00> : vector<4x130xf32>
    %59 = tpu.matmul %56, %58, %cst_38 {dimension_numbers = #tpu.dot_dimension_numbers<[1], [0], [0], [1], [0, 0, 1, 1], [], []>} : vector<4x12xbf16>, vector<12x130xbf16>, vector<4x130xf32> -> vector<4x130xf32>
    %60 = arith.addf %54, %59 : vector<4x130xf32>
    %c0_39 = arith.constant 0 : index
    %c0_40 = arith.constant 0 : index
    %61 = vector.load %arg6[%c0_39, %c0_40] : memref<4x1xf32, #tpu.memory_space<vmem>>, vector<4x1xf32>
    %62 = vector.broadcast %61 : vector<4x1xf32> to vector<4x130xf32>
    %63 = arith.addf %60, %62 : vector<4x130xf32>
    %cst_41 = arith.constant 0.000000e+00 : f32
    %64 = vector.broadcast %cst_41 : f32 to vector<4x130xf32>
    %65 = arith.maximumf %63, %64 : vector<4x130xf32>
    %66 = arith.truncf %65 : vector<4x130xf32> to vector<4x130xbf16>
    %c0_42 = arith.constant 0 : index
    %c0_43 = arith.constant 0 : index
    %67 = vector.load %arg11[%c0_42, %c0_43] : memref<4x130xbf16, #tpu.memory_space<vmem>>, vector<4x130xbf16>
    tpu.vector_store %arg11[%c0_42, %c0_43], %66 {strides = array<i32>} : memref<4x130xbf16, #tpu.memory_space<vmem>>, vector<4x130xbf16>,
    %cst_44 = arith.constant 0.000000e+00 : f32
    %68 = vector.broadcast %cst_44 : f32 to vector<4x128xf32>
    %c0_45 = arith.constant 0 : index
    %c0_46 = arith.constant 0 : index
    %c0_47 = arith.constant 0 : index
    %69 = vector.load %arg7[%c0_45, %c0_46, %c0_47] : memref<3x4x4xbf16, #tpu.memory_space<vmem>>, vector<1x4x4xbf16>
    %70 = vector.shape_cast %69 : vector<1x4x4xbf16> to vector<4x4xbf16>
    %c0_48 = arith.constant 0 : index
    %c0_49 = arith.constant 0 : index
    %71 = vector.load %arg11[%c0_48, %c0_49] : memref<4x130xbf16, #tpu.memory_space<vmem>>, vector<4x128xbf16>
    %cst_50 = arith.constant dense<0.000000e+00> : vector<4x128xf32>
    %72 = tpu.matmul %70, %71, %cst_50 {dimension_numbers = #tpu.dot_dimension_numbers<[1], [0], [0], [1], [0, 0, 1, 1], [], []>} : vector<4x4xbf16>, vector<4x128xbf16>, vector<4x128xf32> -> vector<4x128xf32>
    %73 = arith.addf %68, %72 : vector<4x128xf32>
    %c1_51 = arith.constant 1 : index
    %c0_52 = arith.constant 0 : index
    %c0_53 = arith.constant 0 : index
    %74 = vector.load %arg7[%c1_51, %c0_52, %c0_53] : memref<3x4x4xbf16, #tpu.memory_space<vmem>>, vector<1x4x4xbf16>
    %75 = vector.shape_cast %74 : vector<1x4x4xbf16> to vector<4x4xbf16>
    %c0_54 = arith.constant 0 : index
    %c1_55 = arith.constant 1 : index
    %76 = vector.load %arg11[%c0_54, %c1_55] : memref<4x130xbf16, #tpu.memory_space<vmem>>, vector<4x128xbf16>
    %cst_56 = arith.constant dense<0.000000e+00> : vector<4x128xf32>
    %77 = tpu.matmul %75, %76, %cst_56 {dimension_numbers = #tpu.dot_dimension_numbers<[1], [0], [0], [1], [0, 0, 1, 1], [], []>} : vector<4x4xbf16>, vector<4x128xbf16>, vector<4x128xf32> -> vector<4x128xf32>
    %78 = arith.addf %73, %77 : vector<4x128xf32>
    %c2_57 = arith.constant 2 : index
    %c0_58 = arith.constant 0 : index
    %c0_59 = arith.constant 0 : index
    %79 = vector.load %arg7[%c2_57, %c0_58, %c0_59] : memref<3x4x4xbf16, #tpu.memory_space<vmem>>, vector<1x4x4xbf16>
    %80 = vector.shape_cast %79 : vector<1x4x4xbf16> to vector<4x4xbf16>
    %c0_60 = arith.constant 0 : index
    %c2_61 = arith.constant 2 : index
    %81 = vector.load %arg11[%c0_60, %c2_61] : memref<4x130xbf16, #tpu.memory_space<vmem>>, vector<4x128xbf16>
    %cst_62 = arith.constant dense<0.000000e+00> : vector<4x128xf32>
    %82 = tpu.matmul %80, %81, %cst_62 {dimension_numbers = #tpu.dot_dimension_numbers<[1], [0], [0], [1], [0, 0, 1, 1], [], []>} : vector<4x4xbf16>, vector<4x128xbf16>, vector<4x128xf32> -> vector<4x128xf32>
    %83 = arith.addf %78, %82 : vector<4x128xf32>
    %c0_63 = arith.constant 0 : index
    %c0_64 = arith.constant 0 : index
    %84 = vector.load %arg8[%c0_63, %c0_64] : memref<4x1xf32, #tpu.memory_space<vmem>>, vector<4x1xf32>
    %85 = vector.broadcast %84 : vector<4x1xf32> to vector<4x128xf32>
    %86 = arith.addf %83, %85 : vector<4x128xf32>
    %c0_65 = arith.constant 0 : index
    %c0_66 = arith.constant 0 : index
    %c0_67 = arith.constant 0 : index
    %87 = vector.load %arg9[%c0_65, %c0_66, %c0_67] : memref<1x4x128xf32, #tpu.memory_space<vmem>>, vector<1x4x128xf32>
    %88 = vector.shape_cast %87 : vector<1x4x128xf32> to vector<4x128xf32>
    %89 = vector.shape_cast %86 : vector<4x128xf32> to vector<1x4x128xf32>
    tpu.vector_store %arg9[%c0_65, %c0_66, %c0_67], %89 {strides = array<i32>} : memref<1x4x128xf32, #tpu.memory_space<vmem>>, vector<1x4x128xf32>,
    return
  }
  func.func @transform_0(%arg0: i32) -> (i32, i32, i32) {
    %c0_i32 = arith.constant 0 : i32
    %c0_i32_0 = arith.constant 0 : i32
    %c0_i32_1 = arith.constant 0 : i32
    return %arg0, %c0_i32, %c0_i32_0 : i32, i32, i32
  }
  func.func @transform_1(%arg0: i32) -> (i32, i32, i32) {
    %c0_i32 = arith.constant 0 : i32
    %c0_i32_0 = arith.constant 0 : i32
    %c0_i32_1 = arith.constant 0 : i32
    return %arg0, %c0_i32, %c0_i32_0 : i32, i32, i32
  }
  func.func @transform_2(%arg0: i32) -> (i32, i32) {
    %c0_i32 = arith.constant 0 : i32
    %c0_i32_0 = arith.constant 0 : i32
    %c0_i32_1 = arith.constant 0 : i32
    return %c0_i32, %c0_i32_0 : i32, i32
  }
  func.func @transform_3(%arg0: i32) -> (i32, i32) {
    %c0_i32 = arith.constant 0 : i32
    %c0_i32_0 = arith.constant 0 : i32
    %c0_i32_1 = arith.constant 0 : i32
    return %c0_i32, %c0_i32_0 : i32, i32
  }
  func.func @transform_4(%arg0: i32) -> (i32, i32, i32) {
    %c0_i32 = arith.constant 0 : i32
    %c0_i32_0 = arith.constant 0 : i32
    %c0_i32_1 = arith.constant 0 : i32
    %c0_i32_2 = arith.constant 0 : i32
    return %c0_i32, %c0_i32_0, %c0_i32_1 : i32, i32, i32
  }
  func.func @transform_5(%arg0: i32) -> (i32, i32) {
    %c0_i32 = arith.constant 0 : i32
    %c0_i32_0 = arith.constant 0 : i32
    %c0_i32_1 = arith.constant 0 : i32
    return %c0_i32, %c0_i32_0 : i32, i32
  }
  func.func @transform_6(%arg0: i32) -> (i32, i32, i32) {
    %c0_i32 = arith.constant 0 : i32
    %c0_i32_0 = arith.constant 0 : i32
    %c0_i32_1 = arith.constant 0 : i32
    %c0_i32_2 = arith.constant 0 : i32
    return %c0_i32, %c0_i32_0, %c0_i32_1 : i32, i32, i32
  }
  func.func @transform_7(%arg0: i32) -> (i32, i32) {
    %c0_i32 = arith.constant 0 : i32
    %c0_i32_0 = arith.constant 0 : i32
    %c0_i32_1 = arith.constant 0 : i32
    return %c0_i32, %c0_i32_0 : i32, i32
  }
  func.func @transform_8(%arg0: i32) -> (i32, i32, i32) {
    %c0_i32 = arith.constant 0 : i32
    %c0_i32_0 = arith.constant 0 : i32
    %c0_i32_1 = arith.constant 0 : i32
    return %arg0, %c0_i32, %c0_i32_0 : i32, i32, i32
  }
}

</mosaic_0001>

<llo_original>
// kernel: tpu_custom_call.1
$region0: #{tpu_custom_call.1}
  #allocation0 [shape = 'u32[]', space=smem, size = 0x4, offset = 0x4, fixed_abs, tag = 'smem constant byte address 0x4 - core index']
  #allocation1 [shape = 'u32[144,128]{1,0:T(1,128)}', space=vmem, size = 0x12000, scoped, tag = 'internal scratch']
  #allocation2 [shape = 'f32[12,132]{1,0:T(8,128)}', space=vmem, size = 0x4000, scoped, tag = 'scratch operand']
  #allocation3 [shape = 'bf16[4,130]{1,0:T(4,128)(2,1)}', space=vmem, size = 0x800, scoped, tag = 'scratch operand']
  %s0 = inlined_call_operand.vmem [shape: f32[2,8,8], index: 0, kind: input, shape index: {}]
  %s1 = inlined_call_operand.vmem [shape: f32[2,4,20], index: 1, kind: input, shape index: {}]
  %s2 = inlined_call_operand.vmem [shape: bf16[16,8], index: 2, kind: input, shape index: {}]
  %s3 = inlined_call_operand.vmem [shape: f32[8,1], index: 3, kind: input, shape index: {}]
  %s4 = inlined_call_operand.vmem [shape: bf16[3,4,12], index: 4, kind: input, shape index: {}]
  %s5 = inlined_call_operand.vmem [shape: f32[4,1], index: 5, kind: input, shape index: {}]
  %s6 = inlined_call_operand.vmem [shape: bf16[3,4,4], index: 6, kind: input, shape index: {}]
  %s7 = inlined_call_operand.vmem [shape: f32[4,1], index: 7, kind: input, shape index: {}]
  %s8 = inlined_call_operand.hbm [shape: f32[2,4,128], index: 8, kind: output, shape index: {}]
  %s9 = sld [smem:[#allocation0]]
  $region65: #{tpu_custom_call.1} parent=0
    _
  %s11 = ssub.s32 1, %s9
  %s12 = scalar_select 0, %s11, %s9
  $region1: #{tpu_custom_call.1} parent=0
    #allocation4 [shape = 'u8[4096]{0}', space=vmem, size = 0x1000, scoped, tag = 'output window, operand 0']
    #allocation5 [shape = 's32[2]{0}', space=sflag, size = 0x8, scoped, tag = 'scoped memory for tpu_custom_call.1']
    %13 = vsyncpa [#allocation5], 0
    %s14 = scalar_lea.sflag [#allocation5], 1
    %15 = vsyncpa %s14, 0
    loop: start=0, step=1, limit=4
    $region2: #{tpu_custom_call.1} parent=1 // loop_pre_header
      _
    $region3: #{tpu_custom_call.1} parent=1 // loop_header
      %s17 = sphi 0, %s21
      %p18 = scmp.ge.s32.totalorder %s17, 4
      %s27 = sphi 0, %s29
      %s30 = sphi 0, %s27
      %s31 = sphi 0, %s30
      %s47 = sphi 0, %s31
      %s53 = sphi 0, %s55
      %s56 = sphi 0, %s53
      %s57 = sphi 0, %s56
      %s73 = sphi 0, %s57
      %s77 = sphi 0, %s77
      %s79 = sphi 0, %s77
      %s80 = sphi 0, %s79
      %s94 = sphi 0, %s80
      %s98 = sphi 0, %s98
      %s100 = sphi 0, %s98
      %s101 = sphi 0, %s100
      %s115 = sphi 0, %s101
      %s119 = sphi 0, %s119
      %s121 = sphi 0, %s119
      %s122 = sphi 0, %s121
      %s136 = sphi 0, %s122
      %s140 = sphi 0, %s140
      %s142 = sphi 0, %s140
      %s143 = sphi 0, %s142
      %s157 = sphi 0, %s143
      %s161 = sphi 0, %s161
      %s163 = sphi 0, %s161
      %s164 = sphi 0, %s163
      %s178 = sphi 0, %s164
      %s182 = sphi 0, %s182
      %s184 = sphi 0, %s182
      %s185 = sphi 0, %s184
      %s199 = sphi 0, %s185
      %s205 = sphi 0, %s207
      %s208 = sphi 0, %s205
      %s209 = sphi 0, %s208
      %s225 = sphi 0, %s209
    $region4: #{tpu_custom_call.1} parent=1 // loop_header_branch
      %20 = sbr.rel (%p18) target = $region8
    $region5: #{tpu_custom_call.1} parent=1 // loop_body
      %s22 = ssub.s32 %s17, 1
      %s23 = ssub.s32 %s17, 2
      %s24 = sadd.s32 %s17, 1
      %s25 = ssub.s32 %s17, %s24
      %p26 = scmp.eq.s32.totalorder %s25, 0
      %s28 = sadd.s32 %s27, 1
      %s29 = scalar_select %p26, %s27, %s28
      %p32 = pneg %p26
      %p33 = scmp.eq.s32.totalorder %s17, 1
      %p34 = por %p32, %p33
      %p35 = scmp.ne.s32.totalorder %s27, %s30
      %p36 = scmp.eq.s32.totalorder %s17, 0
      %p37 = por %p35, %p36
      %p38 = scmp.ne.s32.totalorder %s27, %s30
      %p39 = scmp.eq.s32.totalorder %s22, 1
      %p40 = por %p38, %p39
      %p41 = scmp.ne.s32.totalorder %s30, %s31
      %p42 = scmp.eq.s32.totalorder %s22, 0
      %p43 = por %p41, %p42
      %p44 = scmp.ne.s32.totalorder %s30, %s31
      %p45 = scmp.eq.s32.totalorder %s23, 1
      %p46 = por %p44, %p45
      %p48 = scmp.ne.s32.totalorder %s31, %s47
      %p49 = scmp.eq.s32.totalorder %s23, 0
      %p50 = por %p48, %p49
      %s51 = ssub.s32 %s17, %s24
      %p52 = scmp.eq.s32.totalorder %s51, 0
      %s54 = sadd.s32 %s53, 1
      %s55 = scalar_select %p52, %s53, %s54
      %p58 = pneg %p52
      %p59 = scmp.eq.s32.totalorder %s17, 1
      %p60 = por %p58, %p59
      %p61 = scmp.ne.s32.totalorder %s53, %s56
      %p62 = scmp.eq.s32.totalorder %s17, 0
      %p63 = por %p61, %p62
      %p64 = scmp.ne.s32.totalorder %s53, %s56
      %p65 = scmp.eq.s32.totalorder %s22, 1
      %p66 = por %p64, %p65
      %p67 = scmp.ne.s32.totalorder %s56, %s57
      %p68 = scmp.eq.s32.totalorder %s22, 0
      %p69 = por %p67, %p68
      %p70 = scmp.ne.s32.totalorder %s56, %s57
      %p71 = scmp.eq.s32.totalorder %s23, 1
      %p72 = por %p70, %p71
      %p74 = scmp.ne.s32.totalorder %s57, %s73
      %p75 = scmp.eq.s32.totalorder %s23, 0
      %p76 = por %p74, %p75
      %s78 = sadd.s32 %s77, 1
      %p81 = scmp.eq.s32.totalorder %s17, 1
      %p82 = scmp.ne.s32.totalorder %s77, %s79
      %p83 = scmp.eq.s32.totalorder %s17, 0
      %p84 = por %p82, %p83
      %p85 = scmp.ne.s32.totalorder %s77, %s79
      %p86 = scmp.eq.s32.totalorder %s22, 1
      %p87 = por %p85, %p86
      %p88 = scmp.ne.s32.totalorder %s79, %s80
      %p89 = scmp.eq.s32.totalorder %s22, 0
      %p90 = por %p88, %p89
      %p91 = scmp.ne.s32.totalorder %s79, %s80
      %p92 = scmp.eq.s32.totalorder %s23, 1
      %p93 = por %p91, %p92
      %p95 = scmp.ne.s32.totalorder %s80, %s94
      %p96 = scmp.eq.s32.totalorder %s23, 0
      %p97 = por %p95, %p96
      %s99 = sadd.s32 %s98, 1
      %p102 = scmp.eq.s32.totalorder %s17, 1
      %p103 = scmp.ne.s32.totalorder %s98, %s100
      %p104 = scmp.eq.s32.totalorder %s17, 0
      %p105 = por %p103, %p104
      %p106 = scmp.ne.s32.totalorder %s98, %s100
      %p107 = scmp.eq.s32.totalorder %s22, 1
      %p108 = por %p106, %p107
      %p109 = scmp.ne.s32.totalorder %s100, %s101
      %p110 = scmp.eq.s32.totalorder %s22, 0
      %p111 = por %p109, %p110
      %p112 = scmp.ne.s32.totalorder %s100, %s101
      %p113 = scmp.eq.s32.totalorder %s23, 1
      %p114 = por %p112, %p113
      %p116 = scmp.ne.s32.totalorder %s101, %s115
      %p117 = scmp.eq.s32.totalorder %s23, 0
      %p118 = por %p116, %p117
      %s120 = sadd.s32 %s119, 1
      %p123 = scmp.eq.s32.totalorder %s17, 1
      %p124 = scmp.ne.s32.totalorder %s119, %s121
      %p125 = scmp.eq.s32.totalorder %s17, 0
      %p126 = por %p124, %p125
      %p127 = scmp.ne.s32.totalorder %s119, %s121
      %p128 = scmp.eq.s32.totalorder %s22, 1
      %p129 = por %p127, %p128
      %p130 = scmp.ne.s32.totalorder %s121, %s122
      %p131 = scmp.eq.s32.totalorder %s22, 0
      %p132 = por %p130, %p131
      %p133 = scmp.ne.s32.totalorder %s121, %s122
      %p134 = scmp.eq.s32.totalorder %s23, 1
      %p135 = por %p133, %p134
      %p137 = scmp.ne.s32.totalorder %s122, %s136
      %p138 = scmp.eq.s32.totalorder %s23, 0
      %p139 = por %p137, %p138
      %s141 = sadd.s32 %s140, 1
      %p144 = scmp.eq.s32.totalorder %s17, 1
      %p145 = scmp.ne.s32.totalorder %s140, %s142
      %p146 = scmp.eq.s32.totalorder %s17, 0
      %p147 = por %p145, %p146
      %p148 = scmp.ne.s32.totalorder %s140, %s142
      %p149 = scmp.eq.s32.totalorder %s22, 1
      %p150 = por %p148, %p149
      %p151 = scmp.ne.s32.totalorder %s142, %s143
      %p152 = scmp.eq.s32.totalorder %s22, 0
      %p153 = por %p151, %p152
      %p154 = scmp.ne.s32.totalorder %s142, %s143
      %p155 = scmp.eq.s32.totalorder %s23, 1
      %p156 = por %p154, %p155
      %p158 = scmp.ne.s32.totalorder %s143, %s157
      %p159 = scmp.eq.s32.totalorder %s23, 0
      %p160 = por %p158, %p159
      %s162 = sadd.s32 %s161, 1
      %p165 = scmp.eq.s32.totalorder %s17, 1
      %p166 = scmp.ne.s32.totalorder %s161, %s163
      %p167 = scmp.eq.s32.totalorder %s17, 0
      %p168 = por %p166, %p167
      %p169 = scmp.ne.s32.totalorder %s161, %s163
      %p170 = scmp.eq.s32.totalorder %s22, 1
      %p171 = por %p169, %p170
      %p172 = scmp.ne.s32.totalorder %s163, %s164
      %p173 = scmp.eq.s32.totalorder %s22, 0
      %p174 = por %p172, %p173
      %p175 = scmp.ne.s32.totalorder %s163, %s164
      %p176 = scmp.eq.s32.totalorder %s23, 1
      %p177 = por %p175, %p176
      %p179 = scmp.ne.s32.totalorder %s164, %s178
      %p180 = scmp.eq.s32.totalorder %s23, 0
      %p181 = por %p179, %p180
      %s183 = sadd.s32 %s182, 1
      %p186 = scmp.eq.s32.totalorder %s17, 1
      %p187 = scmp.ne.s32.totalorder %s182, %s184
      %p188 = scmp.eq.s32.totalorder %s17, 0
      %p189 = por %p187, %p188
      %p190 = scmp.ne.s32.totalorder %s182, %s184
      %p191 = scmp.eq.s32.totalorder %s22, 1
      %p192 = por %p190, %p191
      %p193 = scmp.ne.s32.totalorder %s184, %s185
      %p194 = scmp.eq.s32.totalorder %s22, 0
      %p195 = por %p193, %p194
      %p196 = scmp.ne.s32.totalorder %s184, %s185
      %p197 = scmp.eq.s32.totalorder %s23, 1
      %p198 = por %p196, %p197
      %p200 = scmp.ne.s32.totalorder %s185, %s199
      %p201 = scmp.eq.s32.totalorder %s23, 0
      %p202 = por %p200, %p201
      %s203 = ssub.s32 %s17, %s24
      %p204 = scmp.eq.s32.totalorder %s203, 0
      %s206 = sadd.s32 %s205, 1
      %s207 = scalar_select %p204, %s205, %s206
      %p210 = pneg %p204
      %p211 = scmp.eq.s32.totalorder %s17, 1
      %p212 = por %p210, %p211
      %p213 = scmp.ne.s32.totalorder %s205, %s208
      %p214 = scmp.eq.s32.totalorder %s17, 0
      %p215 = por %p213, %p214
      %p216 = scmp.ne.s32.totalorder %s205, %s208
      %p217 = scmp.eq.s32.totalorder %s22, 1
      %p218 = por %p216, %p217
      %p219 = scmp.ne.s32.totalorder %s208, %s209
      %p220 = scmp.eq.s32.totalorder %s22, 0
      %p221 = por %p219, %p220
      %p222 = scmp.ne.s32.totalorder %s208, %s209
      %p223 = scmp.eq.s32.totalorder %s23, 1
      %p224 = por %p222, %p223
      %p226 = scmp.ne.s32.totalorder %s209, %s225
      %p227 = scmp.eq.s32.totalorder %s23, 0
      %p228 = por %p226, %p227
      %p229 = scmp.le.s32.totalorder 1, %s17
      %p230 = scmp.lt.s32.totalorder %s17, 3
      %p231 = pnand %p229, %p230
      %p232 = pneg %p231
      // Predicated region
      $region9: #{tpu_custom_call.1} parent=5 // pred_check
        _
      $region10: #{tpu_custom_call.1} parent=5 // pred_check_branch
        %234 = sbr.rel (%p231) target = $region12
      $region11: #{tpu_custom_call.1} parent=5 // pred_region
        %s235 = ssub.s32 %s17, 1
        // Predicated region
        $region13: #{tpu_custom_call.1} parent=11 // pred_check
          %p236 = pneg %p90
        $region14: #{tpu_custom_call.1} parent=11 // pred_check_branch
          %238 = sbr.rel (%p236) target = $region16
        $region15: #{tpu_custom_call.1} parent=11 // pred_region
          _
        $region16: #{tpu_custom_call.1} parent=11 // pred_fallthru
          _
        // Predicated region
        $region17: #{tpu_custom_call.1} parent=11 // pred_check
          %p239 = pneg %p111
        $region18: #{tpu_custom_call.1} parent=11 // pred_check_branch
          %241 = sbr.rel (%p239) target = $region20
        $region19: #{tpu_custom_call.1} parent=11 // pred_region
          _
        $region20: #{tpu_custom_call.1} parent=11 // pred_fallthru
          _
        // Predicated region
        $region21: #{tpu_custom_call.1} parent=11 // pred_check
          %p242 = pneg %p132
        $region22: #{tpu_custom_call.1} parent=11 // pred_check_branch
          %244 = sbr.rel (%p242) target = $region24
        $region23: #{tpu_custom_call.1} parent=11 // pred_region
          _
        $region24: #{tpu_custom_call.1} parent=11 // pred_fallthru
          _
        // Predicated region
        $region25: #{tpu_custom_call.1} parent=11 // pred_check
          %p245 = pneg %p153
        $region26: #{tpu_custom_call.1} parent=11 // pred_check_branch
          %247 = sbr.rel (%p245) target = $region28
        $region27: #{tpu_custom_call.1} parent=11 // pred_region
          _
        $region28: #{tpu_custom_call.1} parent=11 // pred_fallthru
          _
        // Predicated region
        $region29: #{tpu_custom_call.1} parent=11 // pred_check
          %p248 = pneg %p174
        $region30: #{tpu_custom_call.1} parent=11 // pred_check_branch
          %250 = sbr.rel (%p248) target = $region32
        $region31: #{tpu_custom_call.1} parent=11 // pred_region
          _
        $region32: #{tpu_custom_call.1} parent=11 // pred_fallthru
          _
        // Predicated region
        $region33: #{tpu_custom_call.1} parent=11 // pred_check
          %p251 = pneg %p195
        $region34: #{tpu_custom_call.1} parent=11 // pred_check_branch
          %253 = sbr.rel (%p251) target = $region36
        $region35: #{tpu_custom_call.1} parent=11 // pred_region
          _
        $region36: #{tpu_custom_call.1} parent=11 // pred_fallthru
          _
      $region12: #{tpu_custom_call.1} parent=5 // pred_fallthru
        _
      %p254 = scmp.lt.s32.totalorder %s17, 2
      // Predicated region
      $region37: #{tpu_custom_call.1} parent=5 // pred_check
        %p255 = pneg %p254
      $region38: #{tpu_custom_call.1} parent=5 // pred_check_branch
        %257 = sbr.rel (%p255) target = $region40
      $region39: #{tpu_custom_call.1} parent=5 // pred_region
        // Predicated region
        $region41: #{tpu_custom_call.1} parent=39 // pred_check
          %p258 = pneg %p37
        $region42: #{tpu_custom_call.1} parent=39 // pred_check_branch
          %260 = sbr.rel (%p258) target = $region44
        $region43: #{tpu_custom_call.1} parent=39 // pred_region
          %p261 = scmp.lt.s32.totalorder %s17, 1
          %s262 = scalar_select %p261, %s17, 1
          %s263 = smul.addr %s262, 8
          %s264 = scalar_lea.vmem %s0, %s263
        $region44: #{tpu_custom_call.1} parent=39 // pred_fallthru
          _
        // Predicated region
        $region45: #{tpu_custom_call.1} parent=39 // pred_check
          %p265 = pneg %p63
        $region46: #{tpu_custom_call.1} parent=39 // pred_check_branch
          %267 = sbr.rel (%p265) target = $region48
        $region47: #{tpu_custom_call.1} parent=39 // pred_region
          %p268 = scmp.lt.s32.totalorder %s17, 1
          %s269 = scalar_select %p268, %s17, 1
          %s270 = smul.addr %s269, 4
          %s271 = scalar_lea.vmem %s1, %s270
        $region48: #{tpu_custom_call.1} parent=39 // pred_fallthru
          _
      $region40: #{tpu_custom_call.1} parent=5 // pred_fallthru
        _
      %p272 = scmp.le.s32.totalorder 1, %s17
      %p273 = scmp.lt.s32.totalorder %s17, 3
      %p274 = pnand %p272, %p273
      %p275 = pneg %p274
      // Predicated region
      $region49: #{tpu_custom_call.1} parent=5 // pred_check
        _
      $region50: #{tpu_custom_call.1} parent=5 // pred_check_branch
        %277 = sbr.rel (%p274) target = $region52
      $region51: #{tpu_custom_call.1} parent=5 // pred_region
        %s278 = ssub.s32 %s17, 1
        %p279 = scmp.lt.s32.totalorder %s22, 1
        %s280 = scalar_select %p279, %s22, 1
        %s281 = smul.addr %s280, 8
        %s282 = scalar_lea.vmem %s0, %s281
        %p283 = pneg %p43
        %p284 = pneg %p40
        %p285 = scmp.lt.s32.totalorder %s22, 1
        %s286 = scalar_select %p285, %s22, 1
        %s287 = smul.addr %s286, 4
        %s288 = scalar_lea.vmem %s1, %s287
        %p289 = pneg %p69
        %p290 = pneg %p66
        %p291 = pneg %p90
        %p292 = pneg %p87
        %p293 = pneg %p111
        %p294 = pneg %p108
        %p295 = pneg %p132
        %p296 = pneg %p129
        %p297 = pneg %p153
        %p298 = pneg %p150
        %p299 = pneg %p174
        %p300 = pneg %p171
        %p301 = pneg %p195
        %p302 = pneg %p192
        %p303 = pneg %p221
        %p304 = pneg %p218
        %s305 = sand.u32 %s208, 1
        %s306 = scalar_lea.sflag [#allocation5], %s305
        %s307 = sand.u32 %s208, 1
        %s308 = smul.addr %s307, 4
        %s309 = scalar_lea.vmem [#allocation4], %s308
        %p310 = scmp.lt.s32.totalorder %s22, 1
        %s311 = scalar_select %p310, %s22, 1
        %s312 = smul.addr %s311, 8
        %s313 = scalar_lea.vmem %s0, %s312
        %p314 = scmp.lt.s32.totalorder %s22, 1
        %s315 = scalar_select %p314, %s22, 1
        %s316 = smul.addr %s315, 4
        %s317 = scalar_lea.vmem %s1, %s316
        %vm319 = vcmask 1047680
        %320 = vst.msk [vmem:[#allocation2] sm:$0xff] %vm319, 0.0
        %vm321 = vcmask 31744
        %322 = vst.msk [vmem:[#allocation2 + $0x8] sm:$0xff] %vm321, 0.0
        %vm323 = vcmask 1043584
        %324 = vst.msk [vmem:[#allocation2 + $0x10] sm:$0xf] %vm323, 0.0
        %vm325 = vcmask 27648
        %326 = vst.msk [vmem:[#allocation2 + $0x18] sm:$0xf] %vm325, 0.0
        %v327 = vld [vmem:[%s313] sm:$0xff]
        %v328 = vpack.c.bf16 %v327, %v327
        %v329 = vld [vmem:[%s2] sm:$0xf]
        %v330 = vld [vmem:[%s2 + $0x4] sm:$0xf]
        %v333 = vunpack.c.l.b16 %v329
        %v334 = vunpack.c.l.b16 %v330
        %v335 = vpack.c.b16 %v334, %v333
        %vm336 = vcmask 64512
        %v338 = vsel %vm336, %v335, 0
        %vm340 = vcmask 1043456
        %v342 = vsel %vm340, %v328, 0
        %344 = vmatprep.subr.bf16.mxu0 0
        %345 = vmatpush1.bf16.msra.mxu0 %v342
        %346 = vmatprep.subr.bf16.mxu0 0
        %347 = vmatpush1.bf16.msra.mxu0 0
        %348 = vmatprep.subr.bf16.mxu0 0
        %349 = vmatpush1.bf16.msra.mxu0 0
        %350 = vmatprep.subr.bf16.mxu0 0
        %351 = vmatpush1.bf16.msra.mxu0 0
        %352 = vmatprep.subr.bf16.mxu0 0
        %353 = vmatpush1.bf16.msra.mxu0 0
        %354 = vmatprep.subr.bf16.mxu0 0
        %355 = vmatpush1.bf16.msra.mxu0 0
        %356 = vmatprep.subr.bf16.mxu0 0
        %357 = vmatpush1.bf16.msra.mxu0 0
        %358 = vmatprep.subr.bf16.mxu0 0
        %359 = vmatpush1.bf16.msra.mxu0 0
        %360 = vmatprep.subr.bf16.mxu0 0
        %361 = vmatpush1.bf16.msra.mxu0 0
        %362 = vmatprep.subr.bf16.mxu0 0
        %363 = vmatpush1.bf16.msra.mxu0 0
        %364 = vmatprep.subr.bf16.mxu0 0
        %365 = vmatpush1.bf16.msra.mxu0 0
        %366 = vmatprep.subr.bf16.mxu0 0
        %367 = vmatpush1.bf16.msra.mxu0 0
        %368 = vmatprep.subr.bf16.mxu0 0
        %369 = vmatpush1.bf16.msra.mxu0 0
        %370 = vmatprep.subr.bf16.mxu0 0
        %371 = vmatpush1.bf16.msra.mxu0 0
        %372 = vmatprep.subr.bf16.mxu0 0
        %373 = vmatpush1.bf16.msra.mxu0 0
        %374 = vmatprep.subr.bf16.mxu0 0
        %375 = vmatpush1.bf16.msra.mxu0 0
        %376 = vmatprep.mubr.bf16.mxu0 0
        %377 = vmatmul.mubr.bf16.gmra.mrb[0].mxu0 %v338
        %v378 = vpop.f32.mrb[0].mxu0
        %v379 = vadd.f32 0.0, %v378
        %v380 = vpop.f32.mrb[0].mxu0
        %v381 = vpop.f32.mrb[0].mxu0
        %v382 = vadd.f32 0.0, %v381
        %v383 = vpop.f32.mrb[0].mxu0
        %384 = vdwg.mxu0
        %v385 = vld [vmem:[%s3] sm:$0xff]
        %387 = vset.pattern.permute.xlu0 0
        %388 = vperm.xlu0 %387, %v385
        %v389 = vpop.permute.xlu0 %388
        %v391 = vadd.f32 %v379, %v389
        %v392 = vmax.f32 %v391, 0.0
        %v393 = vadd.f32 %v382, %v389
        %v394 = vmax.f32 %v393, 0.0
        %v395 = vlaneseq
        %v396 = vshrl.u32 %v395, 7
        %v397 = vlaneseq
        %v398 = vand.u32 %v397, 127
        %v399 = vmul.u32 %v396, 2
        %vm400 = vcmp.eq.s32.totalorder %v398, %v399
        %v401 = vsel %vm400, 1, 0
        %v402 = vcvt.s32.f32 %v401
        %v403 = vadd.s32 %v399, 1
        %vm404 = vcmp.eq.s32.totalorder %v398, %v403
        %v405 = vsel %vm404, 1, 0
        %v406 = vcvt.s32.f32 %v405
        %v408 = vsel %vm336, %v394, 0
        %410 = vmatprep.subr.mxu0 0.0
        %411 = vmatpush1.msra.mxu0 %v406
        %412 = vmatprep.subr.mxu0 0.0
        %413 = vmatpush1.msra.mxu0 0.0
        %414 = vmatprep.subr.mxu0 0.0
        %415 = vmatpush1.msra.mxu0 0.0
        %416 = vmatprep.subr.mxu0 0.0
        %417 = vmatpush1.msra.mxu0 0.0
        %418 = vmatprep.subr.mxu0 0.0
        %419 = vmatpush1.msra.mxu0 0.0
        %420 = vmatprep.subr.mxu0 0.0
        %421 = vmatpush1.msra.mxu0 0.0
        %422 = vmatprep.subr.mxu0 0.0
        %423 = vmatpush1.msra.mxu0 0.0
        %424 = vmatprep.subr.mxu0 0.0
        %425 = vmatpush1.msra.mxu0 0.0
        %426 = vmatprep.subr.mxu0 0.0
        %427 = vmatpush1.msra.mxu0 0.0
        %428 = vmatprep.subr.mxu0 0.0
        %429 = vmatpush1.msra.mxu0 0.0
        %430 = vmatprep.subr.mxu0 0.0
        %431 = vmatpush1.msra.mxu0 0.0
        %432 = vmatprep.subr.mxu0 0.0
        %433 = vmatpush1.msra.mxu0 0.0
        %434 = vmatprep.subr.mxu0 0.0
        %435 = vmatpush1.msra.mxu0 0.0
        %436 = vmatprep.subr.mxu0 0.0
        %437 = vmatpush1.msra.mxu0 0.0
        %438 = vmatprep.subr.mxu0 0.0
        %439 = vmatpush1.msra.mxu0 0.0
        %440 = vmatprep.subr.mxu0 0.0
        %441 = vmatpush1.msra.mxu0 0.0
        %442 = vmatprep.subr.mxu0 0.0
        %443 = vmatpush1.msra.mxu0 0.0
        %444 = vmatprep.subr.mxu0 0.0
        %445 = vmatpush1.msra.mxu0 0.0
        %446 = vmatprep.subr.mxu0 0.0
        %447 = vmatpush1.msra.mxu0 0.0
        %448 = vmatprep.subr.mxu0 0.0
        %449 = vmatpush1.msra.mxu0 0.0
        %450 = vmatprep.subr.mxu0 0.0
        %451 = vmatpush1.msra.mxu0 0.0
        %452 = vmatprep.subr.mxu0 0.0
        %453 = vmatpush1.msra.mxu0 0.0
        %454 = vmatprep.subr.mxu0 0.0
        %455 = vmatpush1.msra.mxu0 0.0
        %456 = vmatprep.subr.mxu0 0.0
        %457 = vmatpush1.msra.mxu0 0.0
        %458 = vmatprep.subr.mxu0 0.0
        %459 = vmatpush1.msra.mxu0 0.0
        %460 = vmatprep.subr.mxu0 0.0
        %461 = vmatpush1.msra.mxu0 0.0
        %462 = vmatprep.subr.mxu0 0.0
        %463 = vmatpush1.msra.mxu0 0.0
        %464 = vmatprep.subr.mxu0 0.0
        %465 = vmatpush1.msra.mxu0 0.0
        %466 = vmatprep.subr.mxu0 0.0
        %467 = vmatpush1.msra.mxu0 0.0
        %468 = vmatprep.subr.mxu0 0.0
        %469 = vmatpush1.msra.mxu0 0.0
        %470 = vmatprep.subr.mxu0 0.0
        %471 = vmatpush1.msra.mxu0 0.0
        %472 = vmatprep.subr.mxu0 0.0
        %473 = vmatpush1.msra.mxu0 0.0
        %474 = vmatprep.mubr.f32.mxu0 0.0
        %475 = vmatmul.mubr.f32.gmra.mrb[0].mxu0 %v408
        %v476 = vpop.f32.mrb[0].mxu0
        %v477 = vadd.f32 0.0, %v476
        %v478 = vpop.f32.mrb[0].mxu0
        %479 = vdwg.mxu0
        %v481 = vsel %vm336, %v392, 0
        %483 = vmatprep.subr.mxu0 0.0
        %484 = vmatpush1.msra.mxu0 %v402
        %485 = vmatprep.subr.mxu0 0.0
        %486 = vmatpush1.msra.mxu0 0.0
        %487 = vmatprep.subr.mxu0 0.0
        %488 = vmatpush1.msra.mxu0 0.0
        %489 = vmatprep.subr.mxu0 0.0
        %490 = vmatpush1.msra.mxu0 0.0
        %491 = vmatprep.subr.mxu0 0.0
        %492 = vmatpush1.msra.mxu0 0.0
        %493 = vmatprep.subr.mxu0 0.0
        %494 = vmatpush1.msra.mxu0 0.0
        %495 = vmatprep.subr.mxu0 0.0
        %496 = vmatpush1.msra.mxu0 0.0
        %497 = vmatprep.subr.mxu0 0.0
        %498 = vmatpush1.msra.mxu0 0.0
        %499 = vmatprep.subr.mxu0 0.0
        %500 = vmatpush1.msra.mxu0 0.0
        %501 = vmatprep.subr.mxu0 0.0
        %502 = vmatpush1.msra.mxu0 0.0
        %503 = vmatprep.subr.mxu0 0.0
        %504 = vmatpush1.msra.mxu0 0.0
        %505 = vmatprep.subr.mxu0 0.0
        %506 = vmatpush1.msra.mxu0 0.0
        %507 = vmatprep.subr.mxu0 0.0
        %508 = vmatpush1.msra.mxu0 0.0
        %509 = vmatprep.subr.mxu0 0.0
        %510 = vmatpush1.msra.mxu0 0.0
        %511 = vmatprep.subr.mxu0 0.0
        %512 = vmatpush1.msra.mxu0 0.0
        %513 = vmatprep.subr.mxu0 0.0
        %514 = vmatpush1.msra.mxu0 0.0
        %515 = vmatprep.subr.mxu0 0.0
        %516 = vmatpush1.msra.mxu0 0.0
        %517 = vmatprep.subr.mxu0 0.0
        %518 = vmatpush1.msra.mxu0 0.0
        %519 = vmatprep.subr.mxu0 0.0
        %520 = vmatpush1.msra.mxu0 0.0
        %521 = vmatprep.subr.mxu0 0.0
        %522 = vmatpush1.msra.mxu0 0.0
        %523 = vmatprep.subr.mxu0 0.0
        %524 = vmatpush1.msra.mxu0 0.0
        %525 = vmatprep.subr.mxu0 0.0
        %526 = vmatpush1.msra.mxu0 0.0
        %527 = vmatprep.subr.mxu0 0.0
        %528 = vmatpush1.msra.mxu0 0.0
        %529 = vmatprep.subr.mxu0 0.0
        %530 = vmatpush1.msra.mxu0 0.0
        %531 = vmatprep.subr.mxu0 0.0
        %532 = vmatpush1.msra.mxu0 0.0
        %533 = vmatprep.subr.mxu0 0.0
        %534 = vmatpush1.msra.mxu0 0.0
        %535 = vmatprep.subr.mxu0 0.0
        %536 = vmatpush1.msra.mxu0 0.0
        %537 = vmatprep.subr.mxu0 0.0
        %538 = vmatpush1.msra.mxu0 0.0
        %539 = vmatprep.subr.mxu0 0.0
        %540 = vmatpush1.msra.mxu0 0.0
        %541 = vmatprep.subr.mxu0 0.0
        %542 = vmatpush1.msra.mxu0 0.0
        %543 = vmatprep.subr.mxu0 0.0
        %544 = vmatpush1.msra.mxu0 0.0
        %545 = vmatprep.subr.mxu0 0.0
        %546 = vmatpush1.msra.mxu0 0.0
        %547 = vmatprep.mubr.f32.mxu0 0.0
        %548 = vmatmul.mubr.f32.gmra.mrb[0].mxu0 %v481
        %v549 = vpop.f32.mrb[0].mxu0
        %v550 = vadd.f32 %v477, %v549
        %v551 = vpop.f32.mrb[0].mxu0
        %552 = vdwg.mxu0
        %vm553 = vcmask 130048
        %554 = vst.msk [vmem:[#allocation2] sm:$0xff] %vm553, %v550
        %v555 = vld [vmem:[%s317] sm:$0xf]
        %v556 = vmax.f32 %v555, 0.0
        %558 = vrot.lane.b32.xlu0 %v556, 126
        %v559 = vpop.permute.xlu0 %558
        %vm561 = vcmask 125952
        %562 = vst.msk [vmem:[#allocation2 + $0x10] sm:$0xf] %vm561, %v559
        %v563 = vld [vmem:[%s4] sm:$0x3]
        %v564 = vld [vmem:[#allocation2] sm:$0xff]
        %v565 = vld [vmem:[#allocation2 + $0x8] sm:$0xff]
        %v566 = vld [vmem:[#allocation2 + $0x10] sm:$0xf]
        %v567 = vld [vmem:[#allocation2 + $0x18] sm:$0xf]
        %v568 = vpack.c.bf16 %v566, %v564
        %v569 = vpack.c.bf16 %v567, %v565
        %s570 = scalar_lea.vmem %s4, 2
        %v571 = vld [vmem:[%s570] sm:$0x3]
        %574 = vrot.lane.b32.xlu0 %v568, 127
        %v575 = vpop.permute.xlu0 %574
        %576 = vrot.lane.b32.xlu0 %v569, 127
        %v577 = vpop.permute.xlu0 %576
        %vm578 = vcmask 1039360
        %v579 = vsel %vm578, %v575, %v577
        %vm580 = vcmask 97280
        %v582 = vsel %vm580, %v571, 0
        %vm584 = vcmask 1045504
        %v586 = vsel %vm584, %v579, 0
        %v589 = vsel %vm584, %v577, 0
        %591 = vmatprep.subr.bf16.mxu0 %v589
        %592 = vmatpush1.bf16.msra.mxu0 %v586
        %593 = vmatprep.subr.bf16.mxu0 0
        %594 = vmatpush1.bf16.msra.mxu0 0
        %595 = vmatprep.subr.bf16.mxu0 0
        %596 = vmatpush1.bf16.msra.mxu0 0
        %597 = vmatprep.subr.bf16.mxu0 0
        %598 = vmatpush1.bf16.msra.mxu0 0
        %599 = vmatprep.subr.bf16.mxu0 0
        %600 = vmatpush1.bf16.msra.mxu0 0
        %601 = vmatprep.subr.bf16.mxu0 0
        %602 = vmatpush1.bf16.msra.mxu0 0
        %603 = vmatprep.subr.bf16.mxu0 0
        %604 = vmatpush1.bf16.msra.mxu0 0
        %605 = vmatprep.subr.bf16.mxu0 0
        %606 = vmatpush1.bf16.msra.mxu0 0
        %607 = vmatprep.subr.bf16.mxu0 0
        %608 = vmatpush1.bf16.msra.mxu0 0
        %609 = vmatprep.subr.bf16.mxu0 0
        %610 = vmatpush1.bf16.msra.mxu0 0
        %611 = vmatprep.subr.bf16.mxu0 0
        %612 = vmatpush1.bf16.msra.mxu0 0
        %613 = vmatprep.subr.bf16.mxu0 0
        %614 = vmatpush1.bf16.msra.mxu0 0
        %615 = vmatprep.subr.bf16.mxu0 0
        %616 = vmatpush1.bf16.msra.mxu0 0
        %617 = vmatprep.subr.bf16.mxu0 0
        %618 = vmatpush1.bf16.msra.mxu0 0
        %619 = vmatprep.subr.bf16.mxu0 0
        %620 = vmatpush1.bf16.msra.mxu0 0
        %621 = vmatprep.subr.bf16.mxu0 0
        %622 = vmatpush1.bf16.msra.mxu0 0
        %623 = vmatprep.mubr.bf16.mxu0 0
        %624 = vmatmul.mubr.bf16.gmra.mrb[0].mxu0 %v582
        %v625 = vpop.f32.mrb[0].mxu0
        %v626 = vadd.f32 0.0, %v625
        %v627 = vpop.f32.mrb[0].mxu0
        %v628 = vadd.f32 0.0, %v627
        %v629 = vpop.f32.mrb[0].mxu0
        %v630 = vpop.f32.mrb[0].mxu0
        %631 = vdwg.mxu0
        %v633 = vsel %vm580, %v563, 0
        %v636 = vsel %vm584, %v568, 0
        %v639 = vsel %vm584, %v569, 0
        %641 = vmatprep.subr.bf16.mxu0 %v639
        %642 = vmatpush1.bf16.msra.mxu0 %v636
        %643 = vmatprep.subr.bf16.mxu0 0
        %644 = vmatpush1.bf16.msra.mxu0 0
        %645 = vmatprep.subr.bf16.mxu0 0
        %646 = vmatpush1.bf16.msra.mxu0 0
        %647 = vmatprep.subr.bf16.mxu0 0
        %648 = vmatpush1.bf16.msra.mxu0 0
        %649 = vmatprep.subr.bf16.mxu0 0
        %650 = vmatpush1.bf16.msra.mxu0 0
        %651 = vmatprep.subr.bf16.mxu0 0
        %652 = vmatpush1.bf16.msra.mxu0 0
        %653 = vmatprep.subr.bf16.mxu0 0
        %654 = vmatpush1.bf16.msra.mxu0 0
        %655 = vmatprep.subr.bf16.mxu0 0
        %656 = vmatpush1.bf16.msra.mxu0 0
        %657 = vmatprep.subr.bf16.mxu0 0
        %658 = vmatpush1.bf16.msra.mxu0 0
        %659 = vmatprep.subr.bf16.mxu0 0
        %660 = vmatpush1.bf16.msra.mxu0 0
        %661 = vmatprep.subr.bf16.mxu0 0
        %662 = vmatpush1.bf16.msra.mxu0 0
        %663 = vmatprep.subr.bf16.mxu0 0
        %664 = vmatpush1.bf16.msra.mxu0 0
        %665 = vmatprep.subr.bf16.mxu0 0
        %666 = vmatpush1.bf16.msra.mxu0 0
        %667 = vmatprep.subr.bf16.mxu0 0
        %668 = vmatpush1.bf16.msra.mxu0 0
        %669 = vmatprep.subr.bf16.mxu0 0
        %670 = vmatpush1.bf16.msra.mxu0 0
        %671 = vmatprep.subr.bf16.mxu0 0
        %672 = vmatpush1.bf16.msra.mxu0 0
        %673 = vmatprep.mubr.bf16.mxu0 0
        %674 = vmatmul.mubr.bf16.gmra.mrb[0].mxu0 %v633
        %v675 = vpop.f32.mrb[0].mxu0
        %v676 = vadd.f32 %v626, %v675
        %v677 = vpop.f32.mrb[0].mxu0
        %v678 = vadd.f32 %v628, %v677
        %v679 = vpop.f32.mrb[0].mxu0
        %v680 = vpop.f32.mrb[0].mxu0
        %681 = vdwg.mxu0
        %s682 = scalar_lea.vmem %s4, 4
        %v683 = vld [vmem:[%s682] sm:$0x3]
        %684 = vrot.lane.b32.xlu0 %v568, 126
        %v685 = vpop.permute.xlu0 %684
        %686 = vrot.lane.b32.xlu0 %v569, 126
        %v687 = vpop.permute.xlu0 %686
        %vm688 = vcmask 1031168
        %v689 = vsel %vm688, %v685, %v687
        %v691 = vsel %vm580, %v683, 0
        %v694 = vsel %vm584, %v689, 0
        %v697 = vsel %vm584, %v687, 0
        %699 = vmatprep.subr.bf16.mxu0 %v697
        %700 = vmatpush1.bf16.msra.mxu0 %v694
        %701 = vmatprep.subr.bf16.mxu0 0
        %702 = vmatpush1.bf16.msra.mxu0 0
        %703 = vmatprep.subr.bf16.mxu0 0
        %704 = vmatpush1.bf16.msra.mxu0 0
        %705 = vmatprep.subr.bf16.mxu0 0
        %706 = vmatpush1.bf16.msra.mxu0 0
        %707 = vmatprep.subr.bf16.mxu0 0
        %708 = vmatpush1.bf16.msra.mxu0 0
        %709 = vmatprep.subr.bf16.mxu0 0
        %710 = vmatpush1.bf16.msra.mxu0 0
        %711 = vmatprep.subr.bf16.mxu0 0
        %712 = vmatpush1.bf16.msra.mxu0 0
        %713 = vmatprep.subr.bf16.mxu0 0
        %714 = vmatpush1.bf16.msra.mxu0 0
        %715 = vmatprep.subr.bf16.mxu0 0
        %716 = vmatpush1.bf16.msra.mxu0 0
        %717 = vmatprep.subr.bf16.mxu0 0
        %718 = vmatpush1.bf16.msra.mxu0 0
        %719 = vmatprep.subr.bf16.mxu0 0
        %720 = vmatpush1.bf16.msra.mxu0 0
        %721 = vmatprep.subr.bf16.mxu0 0
        %722 = vmatpush1.bf16.msra.mxu0 0
        %723 = vmatprep.subr.bf16.mxu0 0
        %724 = vmatpush1.bf16.msra.mxu0 0
        %725 = vmatprep.subr.bf16.mxu0 0
        %726 = vmatpush1.bf16.msra.mxu0 0
        %727 = vmatprep.subr.bf16.mxu0 0
        %728 = vmatpush1.bf16.msra.mxu0 0
        %729 = vmatprep.subr.bf16.mxu0 0
        %730 = vmatpush1.bf16.msra.mxu0 0
        %731 = vmatprep.mubr.bf16.mxu0 0
        %732 = vmatmul.mubr.bf16.gmra.mrb[0].mxu0 %v691
        %v733 = vpop.f32.mrb[0].mxu0
        %v734 = vadd.f32 0.0, %v733
        %v735 = vpop.f32.mrb[0].mxu0
        %v736 = vadd.f32 0.0, %v735
        %v737 = vpop.f32.mrb[0].mxu0
        %v738 = vpop.f32.mrb[0].mxu0
        %739 = vdwg.mxu0
        %v740 = vadd.f32 %v676, %v734
        %v741 = vadd.f32 %v678, %v736
        %v742 = vld [vmem:[%s5] sm:$0xf]
        %744 = vset.pattern.permute.xlu0 0
        %745 = vperm.xlu0 %744, %v742
        %v746 = vpop.permute.xlu0 %745
        %v748 = vadd.f32 %v740, %v746
        %v749 = vadd.f32 %v741, %v746
        %v750 = vmax.f32 %v748, 0.0
        %v751 = vmax.f32 %v749, 0.0
        %v752 = vpack.c.bf16 %v750, %v750
        %v753 = vpack.c.bf16 %v751, %v751
        %v756 = vcombine.low %v752, %v753
        %v758 = vunpack.c.l.s4 1983009808
        %v759 = vunpack.c.0.s8 %v758
        %v760 = vlaneseq
        %v761 = vshrl.u32 %v760, 7
        %v762 = vsub.s32 %v759, %v761
        %v763 = vrot.slane %v756, %v762
        %vm765 = vcmask 1041408
        %vm766 = vcmask 11266
        %vm767 = vmor %vm766, %vm765
        %768 = vst.msk [vmem:[#allocation3] sm:$0xf] %vm767, %v763
        %v769 = vld [vmem:[%s6] sm:$0x3]
        %v770 = vld [vmem:[#allocation3] sm:$0x3]
        %s771 = scalar_lea.vmem %s6, 2
        %v772 = vld [vmem:[%s771] sm:$0x3]
        %v773 = vld [vmem:[#allocation3] sm:$0xf]
        %v776 = vunpack.c.l.s4 1983009808
        %v777 = vunpack.c.0.s8 %v776
        %v778 = vlaneseq
        %v779 = vshrl.u32 %v778, 7
        %v780 = vsub.s32 %v777, %v779
        %v781 = vrot.slane %v773, %v780
        %v782 = vcombine.high %v781, %v781
        %783 = vrot.lane.b32.xlu0 %v781, 127
        %v784 = vpop.permute.xlu0 %783
        %785 = vrot.lane.b32.xlu0 %v782, 127
        %v786 = vpop.permute.xlu0 %785
        %v787 = vsel %vm578, %v784, %v786
        %v789 = vsel %vm321, %v772, 0
        %v792 = vsel %vm765, %v787, 0
        %794 = vmatprep.subr.bf16.mxu0 0
        %795 = vmatpush1.bf16.msra.mxu0 %v792
        %796 = vmatprep.subr.bf16.mxu0 0
        %797 = vmatpush1.bf16.msra.mxu0 0
        %798 = vmatprep.subr.bf16.mxu0 0
        %799 = vmatpush1.bf16.msra.mxu0 0
        %800 = vmatprep.subr.bf16.mxu0 0
        %801 = vmatpush1.bf16.msra.mxu0 0
        %802 = vmatprep.subr.bf16.mxu0 0
        %803 = vmatpush1.bf16.msra.mxu0 0
        %804 = vmatprep.subr.bf16.mxu0 0
        %805 = vmatpush1.bf16.msra.mxu0 0
        %806 = vmatprep.subr.bf16.mxu0 0
        %807 = vmatpush1.bf16.msra.mxu0 0
        %808 = vmatprep.subr.bf16.mxu0 0
        %809 = vmatpush1.bf16.msra.mxu0 0
        %810 = vmatprep.subr.bf16.mxu0 0
        %811 = vmatpush1.bf16.msra.mxu0 0
        %812 = vmatprep.subr.bf16.mxu0 0
        %813 = vmatpush1.bf16.msra.mxu0 0
        %814 = vmatprep.subr.bf16.mxu0 0
        %815 = vmatpush1.bf16.msra.mxu0 0
        %816 = vmatprep.subr.bf16.mxu0 0
        %817 = vmatpush1.bf16.msra.mxu0 0
        %818 = vmatprep.subr.bf16.mxu0 0
        %819 = vmatpush1.bf16.msra.mxu0 0
        %820 = vmatprep.subr.bf16.mxu0 0
        %821 = vmatpush1.bf16.msra.mxu0 0
        %822 = vmatprep.subr.bf16.mxu0 0
        %823 = vmatpush1.bf16.msra.mxu0 0
        %824 = vmatprep.subr.bf16.mxu0 0
        %825 = vmatpush1.bf16.msra.mxu0 0
        %826 = vmatprep.mubr.bf16.mxu0 0
        %827 = vmatmul.mubr.bf16.gmra.mrb[0].mxu0 %v789
        %v828 = vpop.f32.mrb[0].mxu0
        %v829 = vadd.f32 0.0, %v828
        %v830 = vpop.f32.mrb[0].mxu0
        %v831 = vpop.f32.mrb[0].mxu0
        %v832 = vpop.f32.mrb[0].mxu0
        %833 = vdwg.mxu0
        %v835 = vsel %vm321, %v769, 0
        %v838 = vsel %vm765, %v770, 0
        %840 = vmatprep.subr.bf16.mxu0 0
        %841 = vmatpush1.bf16.msra.mxu0 %v838
        %842 = vmatprep.subr.bf16.mxu0 0
        %843 = vmatpush1.bf16.msra.mxu0 0
        %844 = vmatprep.subr.bf16.mxu0 0
        %845 = vmatpush1.bf16.msra.mxu0 0
        %846 = vmatprep.subr.bf16.mxu0 0
        %847 = vmatpush1.bf16.msra.mxu0 0
        %848 = vmatprep.subr.bf16.mxu0 0
        %849 = vmatpush1.bf16.msra.mxu0 0
        %850 = vmatprep.subr.bf16.mxu0 0
        %851 = vmatpush1.bf16.msra.mxu0 0
        %852 = vmatprep.subr.bf16.mxu0 0
        %853 = vmatpush1.bf16.msra.mxu0 0
        %854 = vmatprep.subr.bf16.mxu0 0
        %855 = vmatpush1.bf16.msra.mxu0 0
        %856 = vmatprep.subr.bf16.mxu0 0
        %857 = vmatpush1.bf16.msra.mxu0 0
        %858 = vmatprep.subr.bf16.mxu0 0
        %859 = vmatpush1.bf16.msra.mxu0 0
        %860 = vmatprep.subr.bf16.mxu0 0
        %861 = vmatpush1.bf16.msra.mxu0 0
        %862 = vmatprep.subr.bf16.mxu0 0
        %863 = vmatpush1.bf16.msra.mxu0 0
        %864 = vmatprep.subr.bf16.mxu0 0
        %865 = vmatpush1.bf16.msra.mxu0 0
        %866 = vmatprep.subr.bf16.mxu0 0
        %867 = vmatpush1.bf16.msra.mxu0 0
        %868 = vmatprep.subr.bf16.mxu0 0
        %869 = vmatpush1.bf16.msra.mxu0 0
        %870 = vmatprep.subr.bf16.mxu0 0
        %871 = vmatpush1.bf16.msra.mxu0 0
        %872 = vmatprep.mubr.bf16.mxu0 0
        %873 = vmatmul.mubr.bf16.gmra.mrb[0].mxu0 %v835
        %v874 = vpop.f32.mrb[0].mxu0
        %v875 = vadd.f32 %v829, %v874
        %v876 = vpop.f32.mrb[0].mxu0
        %v877 = vpop.f32.mrb[0].mxu0
        %v878 = vpop.f32.mrb[0].mxu0
        %879 = vdwg.mxu0
        %s880 = scalar_lea.vmem %s6, 4
        %v881 = vld [vmem:[%s880] sm:$0x3]
        %v882 = vld [vmem:[#allocation3] sm:$0xf]
        %v885 = vunpack.c.l.s4 1983009808
        %v886 = vunpack.c.0.s8 %v885
        %v887 = vlaneseq
        %v888 = vshrl.u32 %v887, 7
        %v889 = vsub.s32 %v886, %v888
        %v890 = vrot.slane %v882, %v889
        %v891 = vcombine.high %v890, %v890
        %892 = vrot.lane.b32.xlu0 %v890, 126
        %v893 = vpop.permute.xlu0 %892
        %894 = vrot.lane.b32.xlu0 %v891, 126
        %v895 = vpop.permute.xlu0 %894
        %v896 = vsel %vm688, %v893, %v895
        %v898 = vsel %vm321, %v881, 0
        %v901 = vsel %vm765, %v896, 0
        %903 = vmatprep.subr.bf16.mxu0 0
        %904 = vmatpush1.bf16.msra.mxu0 %v901
        %905 = vmatprep.subr.bf16.mxu0 0
        %906 = vmatpush1.bf16.msra.mxu0 0
        %907 = vmatprep.subr.bf16.mxu0 0
        %908 = vmatpush1.bf16.msra.mxu0 0
        %909 = vmatprep.subr.bf16.mxu0 0
        %910 = vmatpush1.bf16.msra.mxu0 0
        %911 = vmatprep.subr.bf16.mxu0 0
        %912 = vmatpush1.bf16.msra.mxu0 0
        %913 = vmatprep.subr.bf16.mxu0 0
        %914 = vmatpush1.bf16.msra.mxu0 0
        %915 = vmatprep.subr.bf16.mxu0 0
        %916 = vmatpush1.bf16.msra.mxu0 0
        %917 = vmatprep.subr.bf16.mxu0 0
        %918 = vmatpush1.bf16.msra.mxu0 0
        %919 = vmatprep.subr.bf16.mxu0 0
        %920 = vmatpush1.bf16.msra.mxu0 0
        %921 = vmatprep.subr.bf16.mxu0 0
        %922 = vmatpush1.bf16.msra.mxu0 0
        %923 = vmatprep.subr.bf16.mxu0 0
        %924 = vmatpush1.bf16.msra.mxu0 0
        %925 = vmatprep.subr.bf16.mxu0 0
        %926 = vmatpush1.bf16.msra.mxu0 0
        %927 = vmatprep.subr.bf16.mxu0 0
        %928 = vmatpush1.bf16.msra.mxu0 0
        %929 = vmatprep.subr.bf16.mxu0 0
        %930 = vmatpush1.bf16.msra.mxu0 0
        %931 = vmatprep.subr.bf16.mxu0 0
        %932 = vmatpush1.bf16.msra.mxu0 0
        %933 = vmatprep.subr.bf16.mxu0 0
        %934 = vmatpush1.bf16.msra.mxu0 0
        %935 = vmatprep.mubr.bf16.mxu0 0
        %936 = vmatmul.mubr.bf16.gmra.mrb[0].mxu0 %v898
        %v937 = vpop.f32.mrb[0].mxu0
        %v938 = vadd.f32 0.0, %v937
        %v939 = vpop.f32.mrb[0].mxu0
        %v940 = vpop.f32.mrb[0].mxu0
        %v941 = vpop.f32.mrb[0].mxu0
        %942 = vdwg.mxu0
        %v943 = vadd.f32 %v875, %v938
        %v944 = vld [vmem:[%s7] sm:$0xf]
        %946 = vset.pattern.permute.xlu0 0
        %947 = vperm.xlu0 %946, %v944
        %v948 = vpop.permute.xlu0 %947
        %v950 = vadd.f32 %v943, %v948
        %951 = vst [vmem:[%s309] sm:$0xf] %v950
        %s952 = sand.u32 %s208, 1
        %s953 = scalar_lea.sflag [#allocation5], %s952
        %s954 = sand.u32 %s208, 1
        %s955 = smul.addr %s954, 4
        %s956 = scalar_lea.vmem [#allocation4], %s955
        // Predicated region
        $region53: #{tpu_custom_call.1} parent=51 // pred_check
          %p957 = pneg %p218
        $region54: #{tpu_custom_call.1} parent=51 // pred_check_branch
          %959 = sbr.rel (%p957) target = $region56
        $region55: #{tpu_custom_call.1} parent=51 // pred_region
          %s961 = ssub.s32 64, 64
          %962 = vsyncadd %s953, %s961
          %s963 = smul.addr %s22, 64
          %s964 = scalar_lea.hbm %s8, %s963
          %s966 = sshll.u32 %s956, 4
          %s967 = int_to_ptr.vmem [resolvable:$true] %s966
          %969 = dma.vmem_to_hbm [thread:$0]  %s967, 64, %s964, %s953
        $region56: #{tpu_custom_call.1} parent=51 // pred_fallthru
          _
      $region52: #{tpu_custom_call.1} parent=5 // pred_fallthru
        _
      %p970 = scmp.le.s32.totalorder 2, %s17
      // Predicated region
      $region57: #{tpu_custom_call.1} parent=5 // pred_check
        %p971 = pneg %p970
      $region58: #{tpu_custom_call.1} parent=5 // pred_check_branch
        %973 = sbr.rel (%p971) target = $region60
      $region59: #{tpu_custom_call.1} parent=5 // pred_region
        %s974 = ssub.s32 %s17, 2
        // Predicated region
        $region61: #{tpu_custom_call.1} parent=59 // pred_check
          %p975 = pneg %p224
        $region62: #{tpu_custom_call.1} parent=59 // pred_check_branch
          %977 = sbr.rel (%p975) target = $region64
        $region63: #{tpu_custom_call.1} parent=59 // pred_region
          %s978 = sand.u32 %s209, 1
          %s979 = scalar_lea.sflag [#allocation5], %s978
          %s980 = sand.u32 %s209, 1
          %s981 = smul.addr %s980, 4
          %s982 = scalar_lea.vmem [#allocation4], %s981
          %983 = dma.done %s979, 64
        $region64: #{tpu_custom_call.1} parent=59 // pred_fallthru
          _
      $region60: #{tpu_custom_call.1} parent=5 // pred_fallthru
        _
    $region6: #{tpu_custom_call.1} parent=1 // loop_footer
      %s21 = sadd.s32 1, %s17
    $region7: #{tpu_custom_call.1} parent=1 // loop_footer_branch
      %16 = sbr.rel target = $region3
    $region8: #{tpu_custom_call.1} parent=1 // loop_exit
      _
    %984 = vsyncpa [#allocation5], 1
    %s985 = scalar_lea.sflag [#allocation5], 1
    %986 = vsyncpa %s985, 1

</llo_original>
